<compile_context>
chip_gen: v7x
topology: tpu7x:2x2x1
jax: 0.10.0
libtpu: 0.0.40
codegen_flags: <defaults>
</compile_context>

<pallas_src>
import jax
import jax.numpy as jnp
from jax import lax
from jax.experimental import pallas as pl
from jax.experimental.pallas import tpu as pltpu


def _round_up(x, m):
    return (x + m - 1) // m * m


def dsc_kernel(x_ref, dw_ref, pw_ref, pb_ref, o_ref):
    # x_ref : (1, TH+2, Wp, Cin)  pre-padded row tile (1-row halo top/bottom,
    #                             1-col halo left, right-padded to Wp = mult of 8)
    # dw_ref: (3, 3, Cin)         depthwise weights (compute dtype)
    # pw_ref: (Cin, Coutp)        pointwise weights, Cout padded to mult of 128
    # pb_ref: (1, Coutp)          pointwise bias (f32, depthwise bias pre-folded)
    # o_ref : (1, TH, W, Coutp)
    xt = x_ref[0]                                    # (TH+2, Wp, Cin)
    th = o_ref.shape[1]
    w = o_ref.shape[2]
    wp = xt.shape[1]
    cin = xt.shape[2]

    dw = dw_ref[...]                                 # (3, 3, Cin)

    # Row-shifted views: slices along the leading (non-tiled) dim are free.
    rows = [xt[ky:ky + th] for ky in range(3)]       # each (TH, Wp, Cin)

    # Depthwise 3x3 restructured as: per column-offset kx, accumulate the three
    # row taps (VPU FMAs, f32 accumulate), then align the three column offsets
    # with pltpu.roll on the sublane axis (XLU) - only 2 rolls per tile, no
    # misaligned sublane slices.
    tcol = []
    for kx in range(3):
        t = (rows[0] * dw[0, kx, :]).astype(jnp.float32)
        for ky in range(1, 3):
            t = t + rows[ky] * dw[ky, kx, :]
        tcol.append(t)

    acc = tcol[0]
    acc = acc + pltpu.roll(tcol[1], shift=wp - 1, axis=1)   # align cols w+1 -> w
    acc = acc + pltpu.roll(tcol[2], shift=wp - 2, axis=1)   # align cols w+2 -> w
    # Columns >= w of acc hold wrapped/garbage halo values and are dropped below.

    # Pointwise 1x1 as one tall matmul on the MXU: M = TH*W, K = Cin,
    # N = Coutp (multiple of 128 -> lane-dense stores).  Feed operands in the
    # compute dtype, accumulate in f32.
    lhs = acc[:, :w, :].reshape(th * w, cin).astype(dw.dtype)
    out = jnp.dot(lhs, pw_ref[...], preferred_element_type=jnp.float32)
    out = out + pb_ref[...]
    o_ref[0] = out.reshape(th, w, -1).astype(o_ref.dtype)


def dsc_pallas(x_nchw, dw_torch, db, pw_torch, pb, *, tile_h=None):
    """x_nchw: (N, Cin, H, W); weights follow PyTorch conventions:
       dw_torch: (Cin, 1, 3, 3), db: (Cin,), pw_torch: (Cout, Cin, 1, 1), pb: (Cout,)"""
    N, Cin, H, W = x_nchw.shape
    Cout = pw_torch.shape[0]
    cdt = x_nchw.dtype                      # compute dtype follows the input (bf16 or f32)

    Coutp = _round_up(Cout, 128)            # lane-dense stores / MXU-aligned N
    Wp = _round_up(W + 2, 8)                # sublane-aligned padded width (incl. halo)

    # Row-tile height: biggest tile within a ~1 MiB working-set budget (keeps the
    # double-buffered pipeline well inside scoped VMEM, incl. v7x's 64 MiB).
    if tile_h is None:
        per_row = (Wp * Cin * 2 + W * Coutp) * 4    # rough f32 working bytes / out row
        tile_h = max(8, (1 << 20) // max(per_row, 1))
    TH = int(min(tile_h, H))
    n_t = -(-H // TH)                       # ceil
    Hp = n_t * TH

    # NCHW -> NHWC, zero-pad (conv halo + alignment), and cut into OVERLAPPING
    # row tiles so every DMA'd block already contains its halo rows.
    x_nhwc = jnp.transpose(x_nchw, (0, 2, 3, 1))                       # (N, H, W, Cin)
    xpad = jnp.pad(x_nhwc, ((0, 0), (1, 1 + Hp - H), (1, Wp - W - 1), (0, 0)))
    row_idx = jnp.arange(n_t)[:, None] * TH + jnp.arange(TH + 2)[None, :]
    x_tiles = xpad[:, row_idx].reshape(N * n_t, TH + 2, Wp, Cin)

    # Weight relayout / casts hoisted here (done once in HBM, weights stay
    # resident in VMEM across grid steps).  The depthwise bias is folded into
    # the pointwise bias: point(depth(x)+db) = pw@depth(x) + (pb + pw@db).
    dw = jnp.transpose(dw_torch[:, 0, :, :], (1, 2, 0)).astype(cdt)    # (3, 3, Cin)
    pw_f32 = jnp.transpose(pw_torch[:, :, 0, 0], (1, 0)).astype(jnp.float32)  # (Cin, Cout)
    pb_eff = pb.astype(jnp.float32) + db.astype(jnp.float32) @ pw_f32         # (Cout,)
    pw = jnp.pad(pw_f32.astype(cdt), ((0, 0), (0, Coutp - Cout)))
    pb2 = jnp.pad(pb_eff, (0, Coutp - Cout)).reshape(1, Coutp)

    out_tiles = pl.pallas_call(
        dsc_kernel,
        out_shape=jax.ShapeDtypeStruct((N * n_t, TH, W, Coutp), cdt),
        grid_spec=pltpu.PrefetchScalarGridSpec(
            num_scalar_prefetch=0,
            grid=(N, n_t),
            in_specs=[
                pl.BlockSpec((1, TH + 2, Wp, Cin), lambda n, i: (n * n_t + i, 0, 0, 0)),
                pl.BlockSpec((3, 3, Cin), lambda n, i: (0, 0, 0)),
                pl.BlockSpec((Cin, Coutp), lambda n, i: (0, 0)),
                pl.BlockSpec((1, Coutp), lambda n, i: (0, 0)),
            ],
            out_specs=pl.BlockSpec((1, TH, W, Coutp),
                                   lambda n, i: (n * n_t + i, 0, 0, 0)),
        ),
        compiler_params=pltpu.CompilerParams(
            dimension_semantics=("parallel", "parallel"),
            vmem_limit_bytes=32 * 1024 * 1024),
    )(x_tiles, dw, pw, pb2)

    out = out_tiles.reshape(N, Hp, W, Coutp)[:, :H, :, :Cout]
    return jnp.transpose(out, (0, 3, 1, 2))                            # back to NCHW


def dsc_reference(x_nchw, dw_torch, db, pw_torch, pb):
    """Pure-JAX reference (same semantics as the PyTorch module)."""
    Cin = x_nchw.shape[1]
    dn = ("NCHW", "OIHW", "NCHW")
    out = lax.conv_general_dilated(
        x_nchw, dw_torch, window_strides=(1, 1), padding=((1, 1), (1, 1)),
        feature_group_count=Cin, dimension_numbers=dn)
    out = out + db.reshape(1, Cin, 1, 1)
    out = lax.conv_general_dilated(
        out, pw_torch, window_strides=(1, 1), padding="VALID",
        dimension_numbers=dn)
    out = out + pb.reshape(1, -1, 1, 1)
    return out


if __name__ == "__main__":
    # Small deterministic example: batch=2, in_ch=4, out_ch=8, spatial=16x16.
    N, Cin, Cout, H, W = 2, 4, 8, 16, 16
    key = jax.random.PRNGKey(0)
    kx_, kdw, kdb, kpw, kpb = jax.random.split(key, 5)

    x = jax.random.normal(kx_, (N, Cin, H, W), dtype=jnp.float32)
    dw_torch = jax.random.normal(kdw, (Cin, 1, 3, 3), dtype=jnp.float32) * 0.1
    db = jax.random.normal(kdb, (Cin,), dtype=jnp.float32) * 0.1
    pw_torch = jax.random.normal(kpw, (Cout, Cin, 1, 1), dtype=jnp.float32) * 0.1
    pb = jax.random.normal(kpb, (Cout,), dtype=jnp.float32) * 0.1

    ref = dsc_reference(x, dw_torch, db, pw_torch, pb)

    # Default tiling (single row tile at this toy H).
    out = jax.block_until_ready(dsc_pallas(x, dw_torch, db, pw_torch, pb))
    assert out.shape == (N, Cout, H, W), out.shape
    assert jnp.allclose(out, ref, atol=1e-4, rtol=1e-4), "mismatch vs reference"

    # Forced multi-tile path (exercises the halo row tiles across the grid).
    out_t = jax.block_until_ready(dsc_pallas(x, dw_torch, db, pw_torch, pb, tile_h=8))
    assert jnp.allclose(out_t, ref, atol=1e-4, rtol=1e-4), "mismatch vs reference (tiled)"

    print("KERNEL_OK")
</pallas_src>

<mosaic_0001>
module attributes {stable_mosaic.version = 11 : i64} {
  func.func @dsc_kernel(%arg0: i32, %arg1: i32, %arg2: memref<1x18x24x4xf32, #tpu.memory_space<vmem>>, %arg3: memref<3x3x4xf32, #tpu.memory_space<vmem>>, %arg4: memref<4x128xf32, #tpu.memory_space<vmem>>, %arg5: memref<1x128xf32, #tpu.memory_space<vmem>>, %arg6: memref<1x16x16x128xf32, #tpu.memory_space<vmem>>) attributes {dimension_semantics = [#tpu.dimension_semantics<parallel>, #tpu.dimension_semantics<parallel>], iteration_bounds = array<i64: 2, 1>, scalar_prefetch = 0 : i64, scratch_operands = 0 : i64, tpu.core_type = #tpu.core_type<tc>, window_params = [{transform_indices = @transform_0, window_bounds = array<i64: 1, 18, 24, 4>}, {pipeline_mode = #tpu.pipeline_mode<synchronous>, transform_indices = @transform_1, window_bounds = array<i64: 3, 3, 4>}, {pipeline_mode = #tpu.pipeline_mode<synchronous>, transform_indices = @transform_2, window_bounds = array<i64: 4, 128>}, {pipeline_mode = #tpu.pipeline_mode<synchronous>, transform_indices = @transform_3, window_bounds = array<i64: 1, 128>}, {transform_indices = @transform_4, window_bounds = array<i64: 1, 16, 16, 128>}]} {
    %c0 = arith.constant 0 : index
    %c0_0 = arith.constant 0 : index
    %c0_1 = arith.constant 0 : index
    %c0_2 = arith.constant 0 : index
    %0 = vector.load %arg2[%c0, %c0_0, %c0_1, %c0_2] : memref<1x18x24x4xf32, #tpu.memory_space<vmem>>, vector<1x18x24x4xf32>
    %1 = vector.shape_cast %0 : vector<1x18x24x4xf32> to vector<18x24x4xf32>
    %c0_3 = arith.constant 0 : index
    %c0_4 = arith.constant 0 : index
    %c0_5 = arith.constant 0 : index
    %2 = vector.load %arg3[%c0_3, %c0_4, %c0_5] : memref<3x3x4xf32, #tpu.memory_space<vmem>>, vector<3x3x4xf32>
    %3 = vector.extract_strided_slice %1 {offsets = [0, 0, 0], sizes = [16, 24, 4], strides = [1, 1, 1]} : vector<18x24x4xf32> to vector<16x24x4xf32>
    %4 = vector.extract_strided_slice %1 {offsets = [1, 0, 0], sizes = [16, 24, 4], strides = [1, 1, 1]} : vector<18x24x4xf32> to vector<16x24x4xf32>
    %5 = vector.extract_strided_slice %1 {offsets = [2, 0, 0], sizes = [16, 24, 4], strides = [1, 1, 1]} : vector<18x24x4xf32> to vector<16x24x4xf32>
    %6 = vector.extract_strided_slice %2 {offsets = [0, 0, 0], sizes = [1, 1, 4], strides = [1, 1, 1]} : vector<3x3x4xf32> to vector<1x1x4xf32>
    %7 = vector.shape_cast %6 : vector<1x1x4xf32> to vector<4xf32>
    %8 = vector.shape_cast %7 : vector<4xf32> to vector<1x1x4xf32>
    %9 = vector.broadcast %8 : vector<1x1x4xf32> to vector<16x24x4xf32>
    %10 = arith.mulf %3, %9 : vector<16x24x4xf32>
    %11 = vector.extract_strided_slice %2 {offsets = [1, 0, 0], sizes = [1, 1, 4], strides = [1, 1, 1]} : vector<3x3x4xf32> to vector<1x1x4xf32>
    %12 = vector.shape_cast %11 : vector<1x1x4xf32> to vector<4xf32>
    %13 = vector.shape_cast %12 : vector<4xf32> to vector<1x1x4xf32>
    %14 = vector.broadcast %13 : vector<1x1x4xf32> to vector<16x24x4xf32>
    %15 = arith.mulf %4, %14 : vector<16x24x4xf32>
    %16 = arith.addf %10, %15 : vector<16x24x4xf32>
    %17 = vector.extract_strided_slice %2 {offsets = [2, 0, 0], sizes = [1, 1, 4], strides = [1, 1, 1]} : vector<3x3x4xf32> to vector<1x1x4xf32>
    %18 = vector.shape_cast %17 : vector<1x1x4xf32> to vector<4xf32>
    %19 = vector.shape_cast %18 : vector<4xf32> to vector<1x1x4xf32>
    %20 = vector.broadcast %19 : vector<1x1x4xf32> to vector<16x24x4xf32>
    %21 = arith.mulf %5, %20 : vector<16x24x4xf32>
    %22 = arith.addf %16, %21 : vector<16x24x4xf32>
    %23 = vector.extract_strided_slice %2 {offsets = [0, 1, 0], sizes = [1, 1, 4], strides = [1, 1, 1]} : vector<3x3x4xf32> to vector<1x1x4xf32>
    %24 = vector.shape_cast %23 : vector<1x1x4xf32> to vector<4xf32>
    %25 = vector.shape_cast %24 : vector<4xf32> to vector<1x1x4xf32>
    %26 = vector.broadcast %25 : vector<1x1x4xf32> to vector<16x24x4xf32>
    %27 = arith.mulf %3, %26 : vector<16x24x4xf32>
    %28 = vector.extract_strided_slice %2 {offsets = [1, 1, 0], sizes = [1, 1, 4], strides = [1, 1, 1]} : vector<3x3x4xf32> to vector<1x1x4xf32>
    %29 = vector.shape_cast %28 : vector<1x1x4xf32> to vector<4xf32>
    %30 = vector.shape_cast %29 : vector<4xf32> to vector<1x1x4xf32>
    %31 = vector.broadcast %30 : vector<1x1x4xf32> to vector<16x24x4xf32>
    %32 = arith.mulf %4, %31 : vector<16x24x4xf32>
    %33 = arith.addf %27, %32 : vector<16x24x4xf32>
    %34 = vector.extract_strided_slice %2 {offsets = [2, 1, 0], sizes = [1, 1, 4], strides = [1, 1, 1]} : vector<3x3x4xf32> to vector<1x1x4xf32>
    %35 = vector.shape_cast %34 : vector<1x1x4xf32> to vector<4xf32>
    %36 = vector.shape_cast %35 : vector<4xf32> to vector<1x1x4xf32>
    %37 = vector.broadcast %36 : vector<1x1x4xf32> to vector<16x24x4xf32>
    %38 = arith.mulf %5, %37 : vector<16x24x4xf32>
    %39 = arith.addf %33, %38 : vector<16x24x4xf32>
    %40 = vector.extract_strided_slice %2 {offsets = [0, 2, 0], sizes = [1, 1, 4], strides = [1, 1, 1]} : vector<3x3x4xf32> to vector<1x1x4xf32>
    %41 = vector.shape_cast %40 : vector<1x1x4xf32> to vector<4xf32>
    %42 = vector.shape_cast %41 : vector<4xf32> to vector<1x1x4xf32>
    %43 = vector.broadcast %42 : vector<1x1x4xf32> to vector<16x24x4xf32>
    %44 = arith.mulf %3, %43 : vector<16x24x4xf32>
    %45 = vector.extract_strided_slice %2 {offsets = [1, 2, 0], sizes = [1, 1, 4], strides = [1, 1, 1]} : vector<3x3x4xf32> to vector<1x1x4xf32>
    %46 = vector.shape_cast %45 : vector<1x1x4xf32> to vector<4xf32>
    %47 = vector.shape_cast %46 : vector<4xf32> to vector<1x1x4xf32>
    %48 = vector.broadcast %47 : vector<1x1x4xf32> to vector<16x24x4xf32>
    %49 = arith.mulf %4, %48 : vector<16x24x4xf32>
    %50 = arith.addf %44, %49 : vector<16x24x4xf32>
    %51 = vector.extract_strided_slice %2 {offsets = [2, 2, 0], sizes = [1, 1, 4], strides = [1, 1, 1]} : vector<3x3x4xf32> to vector<1x1x4xf32>
    %52 = vector.shape_cast %51 : vector<1x1x4xf32> to vector<4xf32>
    %53 = vector.shape_cast %52 : vector<4xf32> to vector<1x1x4xf32>
    %54 = vector.broadcast %53 : vector<1x1x4xf32> to vector<16x24x4xf32>
    %55 = arith.mulf %5, %54 : vector<16x24x4xf32>
    %56 = arith.addf %50, %55 : vector<16x24x4xf32>
    %c23_i32 = arith.constant 23 : i32
    %57 = tpu.dynamic_rotate %39 by %c23_i32 dim 1 : vector<16x24x4xf32>, i32 -> vector<16x24x4xf32>
    %58 = arith.addf %22, %57 : vector<16x24x4xf32>
    %c22_i32 = arith.constant 22 : i32
    %59 = tpu.dynamic_rotate %56 by %c22_i32 dim 1 : vector<16x24x4xf32>, i32 -> vector<16x24x4xf32>
    %60 = arith.addf %58, %59 : vector<16x24x4xf32>
    %61 = vector.extract_strided_slice %60 {offsets = [0, 0, 0], sizes = [16, 16, 4], strides = [1, 1, 1]} : vector<16x24x4xf32> to vector<16x16x4xf32>
    %62 = vector.shape_cast %61 : vector<16x16x4xf32> to vector<256x4xf32>
    %c0_6 = arith.constant 0 : index
    %c0_7 = arith.constant 0 : index
    %63 = vector.load %arg4[%c0_6, %c0_7] : memref<4x128xf32, #tpu.memory_space<vmem>>, vector<4x128xf32>
    %cst = arith.constant dense<0.000000e+00> : vector<256x128xf32>
    %64 = tpu.matmul %62, %63, %cst {dimension_numbers = #tpu.dot_dimension_numbers<[1], [0], [0], [1], [0, 0, 1, 1], [], []>} : vector<256x4xf32>, vector<4x128xf32>, vector<256x128xf32> -> vector<256x128xf32>
    %c0_8 = arith.constant 0 : index
    %c0_9 = arith.constant 0 : index
    %65 = vector.load %arg5[%c0_8, %c0_9] : memref<1x128xf32, #tpu.memory_space<vmem>>, vector<1x128xf32>
    %66 = vector.broadcast %65 : vector<1x128xf32> to vector<256x128xf32>
    %67 = arith.addf %64, %66 : vector<256x128xf32>
    %68 = vector.shape_cast %67 : vector<256x128xf32> to vector<16x16x128xf32>
    %c0_10 = arith.constant 0 : index
    %c0_11 = arith.constant 0 : index
    %c0_12 = arith.constant 0 : index
    %c0_13 = arith.constant 0 : index
    %69 = vector.load %arg6[%c0_10, %c0_11, %c0_12, %c0_13] : memref<1x16x16x128xf32, #tpu.memory_space<vmem>>, vector<1x16x16x128xf32>
    %70 = vector.shape_cast %69 : vector<1x16x16x128xf32> to vector<16x16x128xf32>
    %71 = vector.shape_cast %68 : vector<16x16x128xf32> to vector<1x16x16x128xf32>
    tpu.vector_store %arg6[%c0_10, %c0_11, %c0_12, %c0_13], %71 {strides = array<i32>} : memref<1x16x16x128xf32, #tpu.memory_space<vmem>>, vector<1x16x16x128xf32>,
    return
  }
  func.func @transform_0(%arg0: i32, %arg1: i32) -> (i32, i32, i32, i32) {
    %c1_i32 = arith.constant 1 : i32
    %0 = arith.muli %arg0, %c1_i32 : i32
    %1 = arith.addi %0, %arg1 : i32
    %c0_i32 = arith.constant 0 : i32
    %c0_i32_0 = arith.constant 0 : i32
    %c0_i32_1 = arith.constant 0 : i32
    %c0_i32_2 = arith.constant 0 : i32
    return %1, %c0_i32, %c0_i32_0, %c0_i32_1 : i32, i32, i32, i32
  }
  func.func @transform_1(%arg0: i32, %arg1: i32) -> (i32, i32, i32) {
    %c0_i32 = arith.constant 0 : i32
    %c0_i32_0 = arith.constant 0 : i32
    %c0_i32_1 = arith.constant 0 : i32
    %c0_i32_2 = arith.constant 0 : i32
    return %c0_i32, %c0_i32_0, %c0_i32_1 : i32, i32, i32
  }
  func.func @transform_2(%arg0: i32, %arg1: i32) -> (i32, i32) {
    %c0_i32 = arith.constant 0 : i32
    %c0_i32_0 = arith.constant 0 : i32
    %c0_i32_1 = arith.constant 0 : i32
    return %c0_i32, %c0_i32_0 : i32, i32
  }
  func.func @transform_3(%arg0: i32, %arg1: i32) -> (i32, i32) {
    %c0_i32 = arith.constant 0 : i32
    %c0_i32_0 = arith.constant 0 : i32
    %c0_i32_1 = arith.constant 0 : i32
    return %c0_i32, %c0_i32_0 : i32, i32
  }
  func.func @transform_4(%arg0: i32, %arg1: i32) -> (i32, i32, i32, i32) {
    %c1_i32 = arith.constant 1 : i32
    %0 = arith.muli %arg0, %c1_i32 : i32
    %1 = arith.addi %0, %arg1 : i32
    %c0_i32 = arith.constant 0 : i32
    %c0_i32_0 = arith.constant 0 : i32
    %c0_i32_1 = arith.constant 0 : i32
    %c0_i32_2 = arith.constant 0 : i32
    return %1, %c0_i32, %c0_i32_0, %c0_i32_1 : i32, i32, i32, i32
  }
}

</mosaic_0001>

<llo_original>
// kernel: tpu_custom_call.1
$region0: #{tpu_custom_call.1}
  #allocation0 [shape = 'u32[]', space=smem, size = 0x4, offset = 0x4, fixed_abs, tag = 'smem constant byte address 0x4 - core index']
  #allocation1 [shape = 'u32[144,128]{1,0:T(1,128)}', space=vmem, size = 0x12000, scoped, tag = 'internal scratch']
  %s0 = inlined_call_operand.vmem [shape: f32[2,18,24,4], index: 0, kind: input, shape index: {}]
  %s1 = inlined_call_operand.vmem [shape: f32[3,3,4], index: 1, kind: input, shape index: {}]
  %s2 = inlined_call_operand.vmem [shape: f32[4,128], index: 2, kind: input, shape index: {}]
  %s3 = inlined_call_operand.vmem [shape: f32[1,128], index: 3, kind: input, shape index: {}]
  %s4 = inlined_call_operand.hbm [shape: f32[2,16,16,128], index: 4, kind: output, shape index: {}]
  %s5 = sld [smem:[#allocation0]]
  $region49: #{tpu_custom_call.1} parent=0
    _
  %s7 = ssub.s32 1, %s5
  %s8 = scalar_select 0, %s7, %s5
  $region1: #{tpu_custom_call.1} parent=0
    #allocation2 [shape = 'u8[262144]{0}', space=vmem, size = 0x40000, scoped, tag = 'output window, operand 0']
    #allocation3 [shape = 's32[2]{0}', space=sflag, size = 0x8, scoped, tag = 'scoped memory for tpu_custom_call.1']
    %9 = vsyncpa [#allocation3], 0
    %s10 = scalar_lea.sflag [#allocation3], 1
    %11 = vsyncpa %s10, 0
    loop: start=0, step=1, limit=4
    $region2: #{tpu_custom_call.1} parent=1 // loop_pre_header
      _
    $region3: #{tpu_custom_call.1} parent=1 // loop_header
      %s13 = sphi 0, %s17
      %p14 = scmp.ge.s32.totalorder %s13, 4
      %s20 = sphi 0, %s32
      %s21 = sphi 0, %s28
      %s22 = sphi 0, %s20
      %s23 = sphi 0, %s21
      %s24 = sphi 0, %s22
      %s25 = sphi 0, %s23
      %s37 = sphi 0, %s39
      %s40 = sphi 0, %s37
      %s41 = sphi 0, %s40
      %s57 = sphi 0, %s41
      %s61 = sphi 0, %s61
      %s63 = sphi 0, %s61
      %s64 = sphi 0, %s63
      %s78 = sphi 0, %s64
      %s82 = sphi 0, %s82
      %s84 = sphi 0, %s82
      %s85 = sphi 0, %s84
      %s99 = sphi 0, %s85
      %s103 = sphi 0, %s103
      %s105 = sphi 0, %s103
      %s106 = sphi 0, %s105
      %s120 = sphi 0, %s106
      %s128 = sphi 0, %s130
      %s131 = sphi 0, %s128
      %s132 = sphi 0, %s131
      %s148 = sphi 0, %s132
    $region4: #{tpu_custom_call.1} parent=1 // loop_header_branch
      %16 = sbr.rel (%p14) target = $region8
    $region5: #{tpu_custom_call.1} parent=1 // loop_body
      %s18 = ssub.s32 %s13, 1
      %s19 = ssub.s32 %s13, 2
      %s26 = sadd.s32 1, %s21
      %p27 = scmp.ge.s32.totalorder %s26, 1
      %s28 = scalar_select %p27, 0, %s26
      %s29 = sadd.s32 1, %s20
      %s30 = scalar_select %p27, %s29, %s20
      %p31 = scmp.ge.s32.totalorder %s30, 2
      %s32 = scalar_select %p31, 0, %s30
      %s33 = sadd.s32 %s20, %s21
      %s34 = sadd.s32 %s32, %s28
      %s35 = ssub.s32 %s33, %s34
      %p36 = scmp.eq.s32.totalorder %s35, 0
      %s38 = sadd.s32 %s37, 1
      %s39 = scalar_select %p36, %s37, %s38
      %p42 = pneg %p36
      %p43 = scmp.eq.s32.totalorder %s13, 1
      %p44 = por %p42, %p43
      %p45 = scmp.ne.s32.totalorder %s37, %s40
      %p46 = scmp.eq.s32.totalorder %s13, 0
      %p47 = por %p45, %p46
      %p48 = scmp.ne.s32.totalorder %s37, %s40
      %p49 = scmp.eq.s32.totalorder %s18, 1
      %p50 = por %p48, %p49
      %p51 = scmp.ne.s32.totalorder %s40, %s41
      %p52 = scmp.eq.s32.totalorder %s18, 0
      %p53 = por %p51, %p52
      %p54 = scmp.ne.s32.totalorder %s40, %s41
      %p55 = scmp.eq.s32.totalorder %s19, 1
      %p56 = por %p54, %p55
      %p58 = scmp.ne.s32.totalorder %s41, %s57
      %p59 = scmp.eq.s32.totalorder %s19, 0
      %p60 = por %p58, %p59
      %s62 = sadd.s32 %s61, 1
      %p65 = scmp.eq.s32.totalorder %s13, 1
      %p66 = scmp.ne.s32.totalorder %s61, %s63
      %p67 = scmp.eq.s32.totalorder %s13, 0
      %p68 = por %p66, %p67
      %p69 = scmp.ne.s32.totalorder %s61, %s63
      %p70 = scmp.eq.s32.totalorder %s18, 1
      %p71 = por %p69, %p70
      %p72 = scmp.ne.s32.totalorder %s63, %s64
      %p73 = scmp.eq.s32.totalorder %s18, 0
      %p74 = por %p72, %p73
      %p75 = scmp.ne.s32.totalorder %s63, %s64
      %p76 = scmp.eq.s32.totalorder %s19, 1
      %p77 = por %p75, %p76
      %p79 = scmp.ne.s32.totalorder %s64, %s78
      %p80 = scmp.eq.s32.totalorder %s19, 0
      %p81 = por %p79, %p80
      %s83 = sadd.s32 %s82, 1
      %p86 = scmp.eq.s32.totalorder %s13, 1
      %p87 = scmp.ne.s32.totalorder %s82, %s84
      %p88 = scmp.eq.s32.totalorder %s13, 0
      %p89 = por %p87, %p88
      %p90 = scmp.ne.s32.totalorder %s82, %s84
      %p91 = scmp.eq.s32.totalorder %s18, 1
      %p92 = por %p90, %p91
      %p93 = scmp.ne.s32.totalorder %s84, %s85
      %p94 = scmp.eq.s32.totalorder %s18, 0
      %p95 = por %p93, %p94
      %p96 = scmp.ne.s32.totalorder %s84, %s85
      %p97 = scmp.eq.s32.totalorder %s19, 1
      %p98 = por %p96, %p97
      %p100 = scmp.ne.s32.totalorder %s85, %s99
      %p101 = scmp.eq.s32.totalorder %s19, 0
      %p102 = por %p100, %p101
      %s104 = sadd.s32 %s103, 1
      %p107 = scmp.eq.s32.totalorder %s13, 1
      %p108 = scmp.ne.s32.totalorder %s103, %s105
      %p109 = scmp.eq.s32.totalorder %s13, 0
      %p110 = por %p108, %p109
      %p111 = scmp.ne.s32.totalorder %s103, %s105
      %p112 = scmp.eq.s32.totalorder %s18, 1
      %p113 = por %p111, %p112
      %p114 = scmp.ne.s32.totalorder %s105, %s106
      %p115 = scmp.eq.s32.totalorder %s18, 0
      %p116 = por %p114, %p115
      %p117 = scmp.ne.s32.totalorder %s105, %s106
      %p118 = scmp.eq.s32.totalorder %s19, 1
      %p119 = por %p117, %p118
      %p121 = scmp.ne.s32.totalorder %s106, %s120
      %p122 = scmp.eq.s32.totalorder %s19, 0
      %p123 = por %p121, %p122
      %s124 = sadd.s32 %s20, %s21
      %s125 = sadd.s32 %s32, %s28
      %s126 = ssub.s32 %s124, %s125
      %p127 = scmp.eq.s32.totalorder %s126, 0
      %s129 = sadd.s32 %s128, 1
      %s130 = scalar_select %p127, %s128, %s129
      %p133 = pneg %p127
      %p134 = scmp.eq.s32.totalorder %s13, 1
      %p135 = por %p133, %p134
      %p136 = scmp.ne.s32.totalorder %s128, %s131
      %p137 = scmp.eq.s32.totalorder %s13, 0
      %p138 = por %p136, %p137
      %p139 = scmp.ne.s32.totalorder %s128, %s131
      %p140 = scmp.eq.s32.totalorder %s18, 1
      %p141 = por %p139, %p140
      %p142 = scmp.ne.s32.totalorder %s131, %s132
      %p143 = scmp.eq.s32.totalorder %s18, 0
      %p144 = por %p142, %p143
      %p145 = scmp.ne.s32.totalorder %s131, %s132
      %p146 = scmp.eq.s32.totalorder %s19, 1
      %p147 = por %p145, %p146
      %p149 = scmp.ne.s32.totalorder %s132, %s148
      %p150 = scmp.eq.s32.totalorder %s19, 0
      %p151 = por %p149, %p150
      %p152 = scmp.le.s32.totalorder 1, %s13
      %p153 = scmp.lt.s32.totalorder %s13, 3
      %p154 = pnand %p152, %p153
      %p155 = pneg %p154
      // Predicated region
      $region9: #{tpu_custom_call.1} parent=5 // pred_check
        _
      $region10: #{tpu_custom_call.1} parent=5 // pred_check_branch
        %157 = sbr.rel (%p154) target = $region12
      $region11: #{tpu_custom_call.1} parent=5 // pred_region
        %s158 = ssub.s32 %s13, 1
        // Predicated region
        $region13: #{tpu_custom_call.1} parent=11 // pred_check
          %p159 = pneg %p74
        $region14: #{tpu_custom_call.1} parent=11 // pred_check_branch
          %161 = sbr.rel (%p159) target = $region16
        $region15: #{tpu_custom_call.1} parent=11 // pred_region
          _
        $region16: #{tpu_custom_call.1} parent=11 // pred_fallthru
          _
        // Predicated region
        $region17: #{tpu_custom_call.1} parent=11 // pred_check
          %p162 = pneg %p95
        $region18: #{tpu_custom_call.1} parent=11 // pred_check_branch
          %164 = sbr.rel (%p162) target = $region20
        $region19: #{tpu_custom_call.1} parent=11 // pred_region
          _
        $region20: #{tpu_custom_call.1} parent=11 // pred_fallthru
          _
        // Predicated region
        $region21: #{tpu_custom_call.1} parent=11 // pred_check
          %p165 = pneg %p116
        $region22: #{tpu_custom_call.1} parent=11 // pred_check_branch
          %167 = sbr.rel (%p165) target = $region24
        $region23: #{tpu_custom_call.1} parent=11 // pred_region
          _
        $region24: #{tpu_custom_call.1} parent=11 // pred_fallthru
          _
      $region12: #{tpu_custom_call.1} parent=5 // pred_fallthru
        _
      %p168 = scmp.lt.s32.totalorder %s13, 2
      // Predicated region
      $region25: #{tpu_custom_call.1} parent=5 // pred_check
        %p169 = pneg %p168
      $region26: #{tpu_custom_call.1} parent=5 // pred_check_branch
        %171 = sbr.rel (%p169) target = $region28
      $region27: #{tpu_custom_call.1} parent=5 // pred_region
        // Predicated region
        $region29: #{tpu_custom_call.1} parent=27 // pred_check
          %p172 = pneg %p47
        $region30: #{tpu_custom_call.1} parent=27 // pred_check_branch
          %174 = sbr.rel (%p172) target = $region32
        $region31: #{tpu_custom_call.1} parent=27 // pred_region
          %s175 = sadd.s32 %s20, %s21
          %p176 = scmp.lt.s32.totalorder %s175, 1
          %s177 = scalar_select %p176, %s175, 1
          %s178 = smul.addr %s177, 54
          %s179 = smul.addr %s178, 8
          %s180 = scalar_lea.vmem %s0, %s179
          %s181 = sadd.s32 %s20, %s21
        $region32: #{tpu_custom_call.1} parent=27 // pred_fallthru
          _
      $region28: #{tpu_custom_call.1} parent=5 // pred_fallthru
        _
      %p182 = scmp.le.s32.totalorder 1, %s13
      %p183 = scmp.lt.s32.totalorder %s13, 3
      %p184 = pnand %p182, %p183
      %p185 = pneg %p184
      // Predicated region
      $region33: #{tpu_custom_call.1} parent=5 // pred_check
        _
      $region34: #{tpu_custom_call.1} parent=5 // pred_check_branch
        %187 = sbr.rel (%p184) target = $region36
      $region35: #{tpu_custom_call.1} parent=5 // pred_region
        %s188 = ssub.s32 %s13, 1
        %s189 = sadd.s32 %s22, %s23
        %p190 = scmp.lt.s32.totalorder %s189, 1
        %s191 = scalar_select %p190, %s189, 1
        %s192 = smul.addr %s191, 54
        %s193 = smul.addr %s192, 8
        %s194 = scalar_lea.vmem %s0, %s193
        %p195 = pneg %p53
        %p196 = pneg %p50
        %p197 = pneg %p74
        %p198 = pneg %p71
        %p199 = pneg %p95
        %p200 = pneg %p92
        %p201 = pneg %p116
        %p202 = pneg %p113
        %p203 = pneg %p144
        %p204 = pneg %p141
        %s205 = sand.u32 %s131, 1
        %s206 = scalar_lea.sflag [#allocation3], %s205
        %s207 = sand.u32 %s131, 1
        %s208 = smul.addr %s207, 256
        %s209 = scalar_lea.vmem [#allocation2], %s208
        %s210 = sadd.s32 %s22, %s23
        %p211 = scmp.lt.s32.totalorder %s210, 1
        %s212 = scalar_select %p211, %s210, 1
        %s213 = smul.addr %s212, 54
        %s214 = smul.addr %s213, 8
        %s215 = scalar_lea.vmem %s0, %s214
        %s216 = sadd.s32 %s22, %s23
        %s217 = sadd.s32 %s22, %s23
        %v218 = vld [vmem:[%s215] sm:$0xff]
        %v219 = vld [vmem:[%s215 + $0x8] sm:$0xff]
        %v220 = vld [vmem:[%s215 + $0x10] sm:$0xff]
        %v221 = vld [vmem:[%s215 + $0x18] sm:$0xff]
        %v222 = vld [vmem:[%s215 + $0x20] sm:$0xff]
        %v223 = vld [vmem:[%s215 + $0x28] sm:$0xff]
        %v224 = vld [vmem:[%s215 + $0x30] sm:$0xff]
        %v225 = vld [vmem:[%s215 + $0x38] sm:$0xff]
        %v226 = vld [vmem:[%s215 + $0x40] sm:$0xff]
        %v227 = vld [vmem:[%s215 + $0x48] sm:$0xff]
        %v228 = vld [vmem:[%s215 + $0x50] sm:$0xff]
        %v229 = vld [vmem:[%s215 + $0x58] sm:$0xff]
        %v230 = vld [vmem:[%s215 + $0x60] sm:$0xff]
        %v231 = vld [vmem:[%s215 + $0x68] sm:$0xff]
        %v232 = vld [vmem:[%s215 + $0x70] sm:$0xff]
        %v233 = vld [vmem:[%s215 + $0x78] sm:$0xff]
        %v234 = vld [vmem:[%s215 + $0x80] sm:$0xff]
        %v235 = vld [vmem:[%s215 + $0x88] sm:$0xff]
        %v236 = vld [vmem:[%s215 + $0x90] sm:$0xff]
        %v237 = vld [vmem:[%s215 + $0x98] sm:$0xff]
        %v238 = vld [vmem:[%s215 + $0xa0] sm:$0xff]
        %v239 = vld [vmem:[%s215 + $0xa8] sm:$0xff]
        %v240 = vld [vmem:[%s215 + $0xb0] sm:$0xff]
        %v241 = vld [vmem:[%s215 + $0xb8] sm:$0xff]
        %v242 = vld [vmem:[%s215 + $0xc0] sm:$0xff]
        %v243 = vld [vmem:[%s215 + $0xc8] sm:$0xff]
        %v244 = vld [vmem:[%s215 + $0xd0] sm:$0xff]
        %v245 = vld [vmem:[%s215 + $0xd8] sm:$0xff]
        %v246 = vld [vmem:[%s215 + $0xe0] sm:$0xff]
        %v247 = vld [vmem:[%s215 + $0xe8] sm:$0xff]
        %v248 = vld [vmem:[%s215 + $0xf0] sm:$0xff]
        %v249 = vld [vmem:[%s215 + $0xf8] sm:$0xff]
        %v250 = vld [vmem:[%s215 + $0x100] sm:$0xff]
        %v251 = vld [vmem:[%s215 + $0x108] sm:$0xff]
        %v252 = vld [vmem:[%s215 + $0x110] sm:$0xff]
        %v253 = vld [vmem:[%s215 + $0x118] sm:$0xff]
        %v254 = vld [vmem:[%s215 + $0x120] sm:$0xff]
        %v255 = vld [vmem:[%s215 + $0x128] sm:$0xff]
        %v256 = vld [vmem:[%s215 + $0x130] sm:$0xff]
        %v257 = vld [vmem:[%s215 + $0x138] sm:$0xff]
        %v258 = vld [vmem:[%s215 + $0x140] sm:$0xff]
        %v259 = vld [vmem:[%s215 + $0x148] sm:$0xff]
        %v260 = vld [vmem:[%s215 + $0x150] sm:$0xff]
        %v261 = vld [vmem:[%s215 + $0x158] sm:$0xff]
        %v262 = vld [vmem:[%s215 + $0x160] sm:$0xff]
        %v263 = vld [vmem:[%s215 + $0x168] sm:$0xff]
        %v264 = vld [vmem:[%s215 + $0x170] sm:$0xff]
        %v265 = vld [vmem:[%s215 + $0x178] sm:$0xff]
        %v266 = vld [vmem:[%s215 + $0x180] sm:$0xff]
        %v267 = vld [vmem:[%s215 + $0x188] sm:$0xff]
        %v268 = vld [vmem:[%s215 + $0x190] sm:$0xff]
        %v269 = vld [vmem:[%s215 + $0x198] sm:$0xff]
        %v270 = vld [vmem:[%s215 + $0x1a0] sm:$0xff]
        %v271 = vld [vmem:[%s215 + $0x1a8] sm:$0xff]
        %v272 = vld [vmem:[%s1] sm:$0x7]
        %v273 = vld [vmem:[%s1 + $0x4] sm:$0x7]
        %v274 = vld [vmem:[%s1 + $0x8] sm:$0x7]
        %v275 = vlaneseq
        %v276 = vshrl.u32 %v275, 7
        %v277 = vsub.s32 0, %v276
        %v278 = vrot.slane %v272, %v277
        %v279 = vmul.f32 %v218, %v278
        %v280 = vmul.f32 %v219, %v278
        %v281 = vmul.f32 %v221, %v278
        %v282 = vmul.f32 %v222, %v278
        %v283 = vmul.f32 %v224, %v278
        %v284 = vmul.f32 %v225, %v278
        %v285 = vmul.f32 %v227, %v278
        %v286 = vmul.f32 %v228, %v278
        %v287 = vmul.f32 %v230, %v278
        %v288 = vmul.f32 %v231, %v278
        %v289 = vmul.f32 %v233, %v278
        %v290 = vmul.f32 %v234, %v278
        %v291 = vmul.f32 %v236, %v278
        %v292 = vmul.f32 %v237, %v278
        %v293 = vmul.f32 %v239, %v278
        %v294 = vmul.f32 %v240, %v278
        %v295 = vmul.f32 %v242, %v278
        %v296 = vmul.f32 %v243, %v278
        %v297 = vmul.f32 %v245, %v278
        %v298 = vmul.f32 %v246, %v278
        %v299 = vmul.f32 %v248, %v278
        %v300 = vmul.f32 %v249, %v278
        %v301 = vmul.f32 %v251, %v278
        %v302 = vmul.f32 %v252, %v278
        %v303 = vmul.f32 %v254, %v278
        %v304 = vmul.f32 %v255, %v278
        %v305 = vmul.f32 %v257, %v278
        %v306 = vmul.f32 %v258, %v278
        %v307 = vmul.f32 %v260, %v278
        %v308 = vmul.f32 %v261, %v278
        %v309 = vmul.f32 %v263, %v278
        %v310 = vmul.f32 %v264, %v278
        %v311 = vlaneseq
        %v312 = vshrl.u32 %v311, 7
        %v313 = vsub.s32 0, %v312
        %v314 = vrot.slane %v273, %v313
        %v315 = vmul.f32 %v221, %v314
        %v316 = vmul.f32 %v222, %v314
        %v317 = vmul.f32 %v224, %v314
        %v318 = vmul.f32 %v225, %v314
        %v319 = vmul.f32 %v227, %v314
        %v320 = vmul.f32 %v228, %v314
        %v321 = vmul.f32 %v230, %v314
        %v322 = vmul.f32 %v231, %v314
        %v323 = vmul.f32 %v233, %v314
        %v324 = vmul.f32 %v234, %v314
        %v325 = vmul.f32 %v236, %v314
        %v326 = vmul.f32 %v237, %v314
        %v327 = vmul.f32 %v239, %v314
        %v328 = vmul.f32 %v240, %v314
        %v329 = vmul.f32 %v242, %v314
        %v330 = vmul.f32 %v243, %v314
        %v331 = vmul.f32 %v245, %v314
        %v332 = vmul.f32 %v246, %v314
        %v333 = vmul.f32 %v248, %v314
        %v334 = vmul.f32 %v249, %v314
        %v335 = vmul.f32 %v251, %v314
        %v336 = vmul.f32 %v252, %v314
        %v337 = vmul.f32 %v254, %v314
        %v338 = vmul.f32 %v255, %v314
        %v339 = vmul.f32 %v257, %v314
        %v340 = vmul.f32 %v258, %v314
        %v341 = vmul.f32 %v260, %v314
        %v342 = vmul.f32 %v261, %v314
        %v343 = vmul.f32 %v263, %v314
        %v344 = vmul.f32 %v264, %v314
        %v345 = vmul.f32 %v266, %v314
        %v346 = vmul.f32 %v267, %v314
        %v347 = vadd.f32 %v279, %v315
        %v348 = vadd.f32 %v280, %v316
        %v349 = vadd.f32 %v281, %v317
        %v350 = vadd.f32 %v282, %v318
        %v351 = vadd.f32 %v283, %v319
        %v352 = vadd.f32 %v284, %v320
        %v353 = vadd.f32 %v285, %v321
        %v354 = vadd.f32 %v286, %v322
        %v355 = vadd.f32 %v287, %v323
        %v356 = vadd.f32 %v288, %v324
        %v357 = vadd.f32 %v289, %v325
        %v358 = vadd.f32 %v290, %v326
        %v359 = vadd.f32 %v291, %v327
        %v360 = vadd.f32 %v292, %v328
        %v361 = vadd.f32 %v293, %v329
        %v362 = vadd.f32 %v294, %v330
        %v363 = vadd.f32 %v295, %v331
        %v364 = vadd.f32 %v296, %v332
        %v365 = vadd.f32 %v297, %v333
        %v366 = vadd.f32 %v298, %v334
        %v367 = vadd.f32 %v299, %v335
        %v368 = vadd.f32 %v300, %v336
        %v369 = vadd.f32 %v301, %v337
        %v370 = vadd.f32 %v302, %v338
        %v371 = vadd.f32 %v303, %v339
        %v372 = vadd.f32 %v304, %v340
        %v373 = vadd.f32 %v305, %v341
        %v374 = vadd.f32 %v306, %v342
        %v375 = vadd.f32 %v307, %v343
        %v376 = vadd.f32 %v308, %v344
        %v377 = vadd.f32 %v309, %v345
        %v378 = vadd.f32 %v310, %v346
        %v379 = vlaneseq
        %v380 = vshrl.u32 %v379, 7
        %v381 = vsub.s32 0, %v380
        %v382 = vrot.slane %v274, %v381
        %v383 = vmul.f32 %v224, %v382
        %v384 = vmul.f32 %v225, %v382
        %v385 = vmul.f32 %v227, %v382
        %v386 = vmul.f32 %v228, %v382
        %v387 = vmul.f32 %v230, %v382
        %v388 = vmul.f32 %v231, %v382
        %v389 = vmul.f32 %v233, %v382
        %v390 = vmul.f32 %v234, %v382
        %v391 = vmul.f32 %v236, %v382
        %v392 = vmul.f32 %v237, %v382
        %v393 = vmul.f32 %v239, %v382
        %v394 = vmul.f32 %v240, %v382
        %v395 = vmul.f32 %v242, %v382
        %v396 = vmul.f32 %v243, %v382
        %v397 = vmul.f32 %v245, %v382
        %v398 = vmul.f32 %v246, %v382
        %v399 = vmul.f32 %v248, %v382
        %v400 = vmul.f32 %v249, %v382
        %v401 = vmul.f32 %v251, %v382
        %v402 = vmul.f32 %v252, %v382
        %v403 = vmul.f32 %v254, %v382
        %v404 = vmul.f32 %v255, %v382
        %v405 = vmul.f32 %v257, %v382
        %v406 = vmul.f32 %v258, %v382
        %v407 = vmul.f32 %v260, %v382
        %v408 = vmul.f32 %v261, %v382
        %v409 = vmul.f32 %v263, %v382
        %v410 = vmul.f32 %v264, %v382
        %v411 = vmul.f32 %v266, %v382
        %v412 = vmul.f32 %v267, %v382
        %v413 = vmul.f32 %v269, %v382
        %v414 = vmul.f32 %v270, %v382
        %v415 = vadd.f32 %v347, %v383
        %v416 = vadd.f32 %v348, %v384
        %v417 = vadd.f32 %v349, %v385
        %v418 = vadd.f32 %v350, %v386
        %v419 = vadd.f32 %v351, %v387
        %v420 = vadd.f32 %v352, %v388
        %v421 = vadd.f32 %v353, %v389
        %v422 = vadd.f32 %v354, %v390
        %v423 = vadd.f32 %v355, %v391
        %v424 = vadd.f32 %v356, %v392
        %v425 = vadd.f32 %v357, %v393
        %v426 = vadd.f32 %v358, %v394
        %v427 = vadd.f32 %v359, %v395
        %v428 = vadd.f32 %v360, %v396
        %v429 = vadd.f32 %v361, %v397
        %v430 = vadd.f32 %v362, %v398
        %v431 = vadd.f32 %v363, %v399
        %v432 = vadd.f32 %v364, %v400
        %v433 = vadd.f32 %v365, %v401
        %v434 = vadd.f32 %v366, %v402
        %v435 = vadd.f32 %v367, %v403
        %v436 = vadd.f32 %v368, %v404
        %v437 = vadd.f32 %v369, %v405
        %v438 = vadd.f32 %v370, %v406
        %v439 = vadd.f32 %v371, %v407
        %v440 = vadd.f32 %v372, %v408
        %v441 = vadd.f32 %v373, %v409
        %v442 = vadd.f32 %v374, %v410
        %v443 = vadd.f32 %v375, %v411
        %v444 = vadd.f32 %v376, %v412
        %v445 = vadd.f32 %v377, %v413
        %v446 = vadd.f32 %v378, %v414
        %v447 = vlaneseq
        %v448 = vshrl.u32 %v447, 7
        %v449 = vsub.s32 1, %v448
        %v450 = vrot.slane %v272, %v449
        %v451 = vmul.f32 %v218, %v450
        %v452 = vmul.f32 %v219, %v450
        %v453 = vmul.f32 %v220, %v450
        %v454 = vmul.f32 %v221, %v450
        %v455 = vmul.f32 %v222, %v450
        %v456 = vmul.f32 %v223, %v450
        %v457 = vmul.f32 %v224, %v450
        %v458 = vmul.f32 %v225, %v450
        %v459 = vmul.f32 %v226, %v450
        %v460 = vmul.f32 %v227, %v450
        %v461 = vmul.f32 %v228, %v450
        %v462 = vmul.f32 %v229, %v450
        %v463 = vmul.f32 %v230, %v450
        %v464 = vmul.f32 %v231, %v450
        %v465 = vmul.f32 %v232, %v450
        %v466 = vmul.f32 %v233, %v450
        %v467 = vmul.f32 %v234, %v450
        %v468 = vmul.f32 %v235, %v450
        %v469 = vmul.f32 %v236, %v450
        %v470 = vmul.f32 %v237, %v450
        %v471 = vmul.f32 %v238, %v450
        %v472 = vmul.f32 %v239, %v450
        %v473 = vmul.f32 %v240, %v450
        %v474 = vmul.f32 %v241, %v450
        %v475 = vmul.f32 %v242, %v450
        %v476 = vmul.f32 %v243, %v450
        %v477 = vmul.f32 %v244, %v450
        %v478 = vmul.f32 %v245, %v450
        %v479 = vmul.f32 %v246, %v450
        %v480 = vmul.f32 %v247, %v450
        %v481 = vmul.f32 %v248, %v450
        %v482 = vmul.f32 %v249, %v450
        %v483 = vmul.f32 %v250, %v450
        %v484 = vmul.f32 %v251, %v450
        %v485 = vmul.f32 %v252, %v450
        %v486 = vmul.f32 %v253, %v450
        %v487 = vmul.f32 %v254, %v450
        %v488 = vmul.f32 %v255, %v450
        %v489 = vmul.f32 %v256, %v450
        %v490 = vmul.f32 %v257, %v450
        %v491 = vmul.f32 %v258, %v450
        %v492 = vmul.f32 %v259, %v450
        %v493 = vmul.f32 %v260, %v450
        %v494 = vmul.f32 %v261, %v450
        %v495 = vmul.f32 %v262, %v450
        %v496 = vmul.f32 %v263, %v450
        %v497 = vmul.f32 %v264, %v450
        %v498 = vmul.f32 %v265, %v450
        %v499 = vlaneseq
        %v500 = vshrl.u32 %v499, 7
        %v501 = vsub.s32 1, %v500
        %v502 = vrot.slane %v273, %v501
        %v503 = vmul.f32 %v221, %v502
        %v504 = vmul.f32 %v222, %v502
        %v505 = vmul.f32 %v223, %v502
        %v506 = vmul.f32 %v224, %v502
        %v507 = vmul.f32 %v225, %v502
        %v508 = vmul.f32 %v226, %v502
        %v509 = vmul.f32 %v227, %v502
        %v510 = vmul.f32 %v228, %v502
        %v511 = vmul.f32 %v229, %v502
        %v512 = vmul.f32 %v230, %v502
        %v513 = vmul.f32 %v231, %v502
        %v514 = vmul.f32 %v232, %v502
        %v515 = vmul.f32 %v233, %v502
        %v516 = vmul.f32 %v234, %v502
        %v517 = vmul.f32 %v235, %v502
        %v518 = vmul.f32 %v236, %v502
        %v519 = vmul.f32 %v237, %v502
        %v520 = vmul.f32 %v238, %v502
        %v521 = vmul.f32 %v239, %v502
        %v522 = vmul.f32 %v240, %v502
        %v523 = vmul.f32 %v241, %v502
        %v524 = vmul.f32 %v242, %v502
        %v525 = vmul.f32 %v243, %v502
        %v526 = vmul.f32 %v244, %v502
        %v527 = vmul.f32 %v245, %v502
        %v528 = vmul.f32 %v246, %v502
        %v529 = vmul.f32 %v247, %v502
        %v530 = vmul.f32 %v248, %v502
        %v531 = vmul.f32 %v249, %v502
        %v532 = vmul.f32 %v250, %v502
        %v533 = vmul.f32 %v251, %v502
        %v534 = vmul.f32 %v252, %v502
        %v535 = vmul.f32 %v253, %v502
        %v536 = vmul.f32 %v254, %v502
        %v537 = vmul.f32 %v255, %v502
        %v538 = vmul.f32 %v256, %v502
        %v539 = vmul.f32 %v257, %v502
        %v540 = vmul.f32 %v258, %v502
        %v541 = vmul.f32 %v259, %v502
        %v542 = vmul.f32 %v260, %v502
        %v543 = vmul.f32 %v261, %v502
        %v544 = vmul.f32 %v262, %v502
        %v545 = vmul.f32 %v263, %v502
        %v546 = vmul.f32 %v264, %v502
        %v547 = vmul.f32 %v265, %v502
        %v548 = vmul.f32 %v266, %v502
        %v549 = vmul.f32 %v267, %v502
        %v550 = vmul.f32 %v268, %v502
        %v551 = vadd.f32 %v451, %v503
        %v552 = vadd.f32 %v452, %v504
        %v553 = vadd.f32 %v453, %v505
        %v554 = vadd.f32 %v454, %v506
        %v555 = vadd.f32 %v455, %v507
        %v556 = vadd.f32 %v456, %v508
        %v557 = vadd.f32 %v457, %v509
        %v558 = vadd.f32 %v458, %v510
        %v559 = vadd.f32 %v459, %v511
        %v560 = vadd.f32 %v460, %v512
        %v561 = vadd.f32 %v461, %v513
        %v562 = vadd.f32 %v462, %v514
        %v563 = vadd.f32 %v463, %v515
        %v564 = vadd.f32 %v464, %v516
        %v565 = vadd.f32 %v465, %v517
        %v566 = vadd.f32 %v466, %v518
        %v567 = vadd.f32 %v467, %v519
        %v568 = vadd.f32 %v468, %v520
        %v569 = vadd.f32 %v469, %v521
        %v570 = vadd.f32 %v470, %v522
        %v571 = vadd.f32 %v471, %v523
        %v572 = vadd.f32 %v472, %v524
        %v573 = vadd.f32 %v473, %v525
        %v574 = vadd.f32 %v474, %v526
        %v575 = vadd.f32 %v475, %v527
        %v576 = vadd.f32 %v476, %v528
        %v577 = vadd.f32 %v477, %v529
        %v578 = vadd.f32 %v478, %v530
        %v579 = vadd.f32 %v479, %v531
        %v580 = vadd.f32 %v480, %v532
        %v581 = vadd.f32 %v481, %v533
        %v582 = vadd.f32 %v482, %v534
        %v583 = vadd.f32 %v483, %v535
        %v584 = vadd.f32 %v484, %v536
        %v585 = vadd.f32 %v485, %v537
        %v586 = vadd.f32 %v486, %v538
        %v587 = vadd.f32 %v487, %v539
        %v588 = vadd.f32 %v488, %v540
        %v589 = vadd.f32 %v489, %v541
        %v590 = vadd.f32 %v490, %v542
        %v591 = vadd.f32 %v491, %v543
        %v592 = vadd.f32 %v492, %v544
        %v593 = vadd.f32 %v493, %v545
        %v594 = vadd.f32 %v494, %v546
        %v595 = vadd.f32 %v495, %v547
        %v596 = vadd.f32 %v496, %v548
        %v597 = vadd.f32 %v497, %v549
        %v598 = vadd.f32 %v498, %v550
        %v599 = vlaneseq
        %v600 = vshrl.u32 %v599, 7
        %v601 = vsub.s32 1, %v600
        %v602 = vrot.slane %v274, %v601
        %v603 = vmul.f32 %v224, %v602
        %v604 = vmul.f32 %v225, %v602
        %v605 = vmul.f32 %v226, %v602
        %v606 = vmul.f32 %v227, %v602
        %v607 = vmul.f32 %v228, %v602
        %v608 = vmul.f32 %v229, %v602
        %v609 = vmul.f32 %v230, %v602
        %v610 = vmul.f32 %v231, %v602
        %v611 = vmul.f32 %v232, %v602
        %v612 = vmul.f32 %v233, %v602
        %v613 = vmul.f32 %v234, %v602
        %v614 = vmul.f32 %v235, %v602
        %v615 = vmul.f32 %v236, %v602
        %v616 = vmul.f32 %v237, %v602
        %v617 = vmul.f32 %v238, %v602
        %v618 = vmul.f32 %v239, %v602
        %v619 = vmul.f32 %v240, %v602
        %v620 = vmul.f32 %v241, %v602
        %v621 = vmul.f32 %v242, %v602
        %v622 = vmul.f32 %v243, %v602
        %v623 = vmul.f32 %v244, %v602
        %v624 = vmul.f32 %v245, %v602
        %v625 = vmul.f32 %v246, %v602
        %v626 = vmul.f32 %v247, %v602
        %v627 = vmul.f32 %v248, %v602
        %v628 = vmul.f32 %v249, %v602
        %v629 = vmul.f32 %v250, %v602
        %v630 = vmul.f32 %v251, %v602
        %v631 = vmul.f32 %v252, %v602
        %v632 = vmul.f32 %v253, %v602
        %v633 = vmul.f32 %v254, %v602
        %v634 = vmul.f32 %v255, %v602
        %v635 = vmul.f32 %v256, %v602
        %v636 = vmul.f32 %v257, %v602
        %v637 = vmul.f32 %v258, %v602
        %v638 = vmul.f32 %v259, %v602
        %v639 = vmul.f32 %v260, %v602
        %v640 = vmul.f32 %v261, %v602
        %v641 = vmul.f32 %v262, %v602
        %v642 = vmul.f32 %v263, %v602
        %v643 = vmul.f32 %v264, %v602
        %v644 = vmul.f32 %v265, %v602
        %v645 = vmul.f32 %v266, %v602
        %v646 = vmul.f32 %v267, %v602
        %v647 = vmul.f32 %v268, %v602
        %v648 = vmul.f32 %v269, %v602
        %v649 = vmul.f32 %v270, %v602
        %v650 = vmul.f32 %v271, %v602
        %v651 = vadd.f32 %v551, %v603
        %v652 = vadd.f32 %v552, %v604
        %v653 = vadd.f32 %v553, %v605
        %v654 = vadd.f32 %v554, %v606
        %v655 = vadd.f32 %v555, %v607
        %v656 = vadd.f32 %v556, %v608
        %v657 = vadd.f32 %v557, %v609
        %v658 = vadd.f32 %v558, %v610
        %v659 = vadd.f32 %v559, %v611
        %v660 = vadd.f32 %v560, %v612
        %v661 = vadd.f32 %v561, %v613
        %v662 = vadd.f32 %v562, %v614
        %v663 = vadd.f32 %v563, %v615
        %v664 = vadd.f32 %v564, %v616
        %v665 = vadd.f32 %v565, %v617
        %v666 = vadd.f32 %v566, %v618
        %v667 = vadd.f32 %v567, %v619
        %v668 = vadd.f32 %v568, %v620
        %v669 = vadd.f32 %v569, %v621
        %v670 = vadd.f32 %v570, %v622
        %v671 = vadd.f32 %v571, %v623
        %v672 = vadd.f32 %v572, %v624
        %v673 = vadd.f32 %v573, %v625
        %v674 = vadd.f32 %v574, %v626
        %v675 = vadd.f32 %v575, %v627
        %v676 = vadd.f32 %v576, %v628
        %v677 = vadd.f32 %v577, %v629
        %v678 = vadd.f32 %v578, %v630
        %v679 = vadd.f32 %v579, %v631
        %v680 = vadd.f32 %v580, %v632
        %v681 = vadd.f32 %v581, %v633
        %v682 = vadd.f32 %v582, %v634
        %v683 = vadd.f32 %v583, %v635
        %v684 = vadd.f32 %v584, %v636
        %v685 = vadd.f32 %v585, %v637
        %v686 = vadd.f32 %v586, %v638
        %v687 = vadd.f32 %v587, %v639
        %v688 = vadd.f32 %v588, %v640
        %v689 = vadd.f32 %v589, %v641
        %v690 = vadd.f32 %v590, %v642
        %v691 = vadd.f32 %v591, %v643
        %v692 = vadd.f32 %v592, %v644
        %v693 = vadd.f32 %v593, %v645
        %v694 = vadd.f32 %v594, %v646
        %v695 = vadd.f32 %v595, %v647
        %v696 = vadd.f32 %v596, %v648
        %v697 = vadd.f32 %v597, %v649
        %v698 = vadd.f32 %v598, %v650
        %v699 = vlaneseq
        %v700 = vshrl.u32 %v699, 7
        %v701 = vsub.s32 2, %v700
        %v702 = vrot.slane %v272, %v701
        %v703 = vmul.f32 %v218, %v702
        %v704 = vmul.f32 %v219, %v702
        %v705 = vmul.f32 %v220, %v702
        %v706 = vmul.f32 %v221, %v702
        %v707 = vmul.f32 %v222, %v702
        %v708 = vmul.f32 %v223, %v702
        %v709 = vmul.f32 %v224, %v702
        %v710 = vmul.f32 %v225, %v702
        %v711 = vmul.f32 %v226, %v702
        %v712 = vmul.f32 %v227, %v702
        %v713 = vmul.f32 %v228, %v702
        %v714 = vmul.f32 %v229, %v702
        %v715 = vmul.f32 %v230, %v702
        %v716 = vmul.f32 %v231, %v702
        %v717 = vmul.f32 %v232, %v702
        %v718 = vmul.f32 %v233, %v702
        %v719 = vmul.f32 %v234, %v702
        %v720 = vmul.f32 %v235, %v702
        %v721 = vmul.f32 %v236, %v702
        %v722 = vmul.f32 %v237, %v702
        %v723 = vmul.f32 %v238, %v702
        %v724 = vmul.f32 %v239, %v702
        %v725 = vmul.f32 %v240, %v702
        %v726 = vmul.f32 %v241, %v702
        %v727 = vmul.f32 %v242, %v702
        %v728 = vmul.f32 %v243, %v702
        %v729 = vmul.f32 %v244, %v702
        %v730 = vmul.f32 %v245, %v702
        %v731 = vmul.f32 %v246, %v702
        %v732 = vmul.f32 %v247, %v702
        %v733 = vmul.f32 %v248, %v702
        %v734 = vmul.f32 %v249, %v702
        %v735 = vmul.f32 %v250, %v702
        %v736 = vmul.f32 %v251, %v702
        %v737 = vmul.f32 %v252, %v702
        %v738 = vmul.f32 %v253, %v702
        %v739 = vmul.f32 %v254, %v702
        %v740 = vmul.f32 %v255, %v702
        %v741 = vmul.f32 %v256, %v702
        %v742 = vmul.f32 %v257, %v702
        %v743 = vmul.f32 %v258, %v702
        %v744 = vmul.f32 %v259, %v702
        %v745 = vmul.f32 %v260, %v702
        %v746 = vmul.f32 %v261, %v702
        %v747 = vmul.f32 %v262, %v702
        %v748 = vmul.f32 %v263, %v702
        %v749 = vmul.f32 %v264, %v702
        %v750 = vmul.f32 %v265, %v702
        %v751 = vlaneseq
        %v752 = vshrl.u32 %v751, 7
        %v753 = vsub.s32 2, %v752
        %v754 = vrot.slane %v273, %v753
        %v755 = vmul.f32 %v221, %v754
        %v756 = vmul.f32 %v222, %v754
        %v757 = vmul.f32 %v223, %v754
        %v758 = vmul.f32 %v224, %v754
        %v759 = vmul.f32 %v225, %v754
        %v760 = vmul.f32 %v226, %v754
        %v761 = vmul.f32 %v227, %v754
        %v762 = vmul.f32 %v228, %v754
        %v763 = vmul.f32 %v229, %v754
        %v764 = vmul.f32 %v230, %v754
        %v765 = vmul.f32 %v231, %v754
        %v766 = vmul.f32 %v232, %v754
        %v767 = vmul.f32 %v233, %v754
        %v768 = vmul.f32 %v234, %v754
        %v769 = vmul.f32 %v235, %v754
        %v770 = vmul.f32 %v236, %v754
        %v771 = vmul.f32 %v237, %v754
        %v772 = vmul.f32 %v238, %v754
        %v773 = vmul.f32 %v239, %v754
        %v774 = vmul.f32 %v240, %v754
        %v775 = vmul.f32 %v241, %v754
        %v776 = vmul.f32 %v242, %v754
        %v777 = vmul.f32 %v243, %v754
        %v778 = vmul.f32 %v244, %v754
        %v779 = vmul.f32 %v245, %v754
        %v780 = vmul.f32 %v246, %v754
        %v781 = vmul.f32 %v247, %v754
        %v782 = vmul.f32 %v248, %v754
        %v783 = vmul.f32 %v249, %v754
        %v784 = vmul.f32 %v250, %v754
        %v785 = vmul.f32 %v251, %v754
        %v786 = vmul.f32 %v252, %v754
        %v787 = vmul.f32 %v253, %v754
        %v788 = vmul.f32 %v254, %v754
        %v789 = vmul.f32 %v255, %v754
        %v790 = vmul.f32 %v256, %v754
        %v791 = vmul.f32 %v257, %v754
        %v792 = vmul.f32 %v258, %v754
        %v793 = vmul.f32 %v259, %v754
        %v794 = vmul.f32 %v260, %v754
        %v795 = vmul.f32 %v261, %v754
        %v796 = vmul.f32 %v262, %v754
        %v797 = vmul.f32 %v263, %v754
        %v798 = vmul.f32 %v264, %v754
        %v799 = vmul.f32 %v265, %v754
        %v800 = vmul.f32 %v266, %v754
        %v801 = vmul.f32 %v267, %v754
        %v802 = vmul.f32 %v268, %v754
        %v803 = vadd.f32 %v703, %v755
        %v804 = vadd.f32 %v704, %v756
        %v805 = vadd.f32 %v705, %v757
        %v806 = vadd.f32 %v706, %v758
        %v807 = vadd.f32 %v707, %v759
        %v808 = vadd.f32 %v708, %v760
        %v809 = vadd.f32 %v709, %v761
        %v810 = vadd.f32 %v710, %v762
        %v811 = vadd.f32 %v711, %v763
        %v812 = vadd.f32 %v712, %v764
        %v813 = vadd.f32 %v713, %v765
        %v814 = vadd.f32 %v714, %v766
        %v815 = vadd.f32 %v715, %v767
        %v816 = vadd.f32 %v716, %v768
        %v817 = vadd.f32 %v717, %v769
        %v818 = vadd.f32 %v718, %v770
        %v819 = vadd.f32 %v719, %v771
        %v820 = vadd.f32 %v720, %v772
        %v821 = vadd.f32 %v721, %v773
        %v822 = vadd.f32 %v722, %v774
        %v823 = vadd.f32 %v723, %v775
        %v824 = vadd.f32 %v724, %v776
        %v825 = vadd.f32 %v725, %v777
        %v826 = vadd.f32 %v726, %v778
        %v827 = vadd.f32 %v727, %v779
        %v828 = vadd.f32 %v728, %v780
        %v829 = vadd.f32 %v729, %v781
        %v830 = vadd.f32 %v730, %v782
        %v831 = vadd.f32 %v731, %v783
        %v832 = vadd.f32 %v732, %v784
        %v833 = vadd.f32 %v733, %v785
        %v834 = vadd.f32 %v734, %v786
        %v835 = vadd.f32 %v735, %v787
        %v836 = vadd.f32 %v736, %v788
        %v837 = vadd.f32 %v737, %v789
        %v838 = vadd.f32 %v738, %v790
        %v839 = vadd.f32 %v739, %v791
        %v840 = vadd.f32 %v740, %v792
        %v841 = vadd.f32 %v741, %v793
        %v842 = vadd.f32 %v742, %v794
        %v843 = vadd.f32 %v743, %v795
        %v844 = vadd.f32 %v744, %v796
        %v845 = vadd.f32 %v745, %v797
        %v846 = vadd.f32 %v746, %v798
        %v847 = vadd.f32 %v747, %v799
        %v848 = vadd.f32 %v748, %v800
        %v849 = vadd.f32 %v749, %v801
        %v850 = vadd.f32 %v750, %v802
        %v851 = vlaneseq
        %v852 = vshrl.u32 %v851, 7
        %v853 = vsub.s32 2, %v852
        %v854 = vrot.slane %v274, %v853
        %v855 = vmul.f32 %v224, %v854
        %v856 = vmul.f32 %v225, %v854
        %v857 = vmul.f32 %v226, %v854
        %v858 = vmul.f32 %v227, %v854
        %v859 = vmul.f32 %v228, %v854
        %v860 = vmul.f32 %v229, %v854
        %v861 = vmul.f32 %v230, %v854
        %v862 = vmul.f32 %v231, %v854
        %v863 = vmul.f32 %v232, %v854
        %v864 = vmul.f32 %v233, %v854
        %v865 = vmul.f32 %v234, %v854
        %v866 = vmul.f32 %v235, %v854
        %v867 = vmul.f32 %v236, %v854
        %v868 = vmul.f32 %v237, %v854
        %v869 = vmul.f32 %v238, %v854
        %v870 = vmul.f32 %v239, %v854
        %v871 = vmul.f32 %v240, %v854
        %v872 = vmul.f32 %v241, %v854
        %v873 = vmul.f32 %v242, %v854
        %v874 = vmul.f32 %v243, %v854
        %v875 = vmul.f32 %v244, %v854
        %v876 = vmul.f32 %v245, %v854
        %v877 = vmul.f32 %v246, %v854
        %v878 = vmul.f32 %v247, %v854
        %v879 = vmul.f32 %v248, %v854
        %v880 = vmul.f32 %v249, %v854
        %v881 = vmul.f32 %v250, %v854
        %v882 = vmul.f32 %v251, %v854
        %v883 = vmul.f32 %v252, %v854
        %v884 = vmul.f32 %v253, %v854
        %v885 = vmul.f32 %v254, %v854
        %v886 = vmul.f32 %v255, %v854
        %v887 = vmul.f32 %v256, %v854
        %v888 = vmul.f32 %v257, %v854
        %v889 = vmul.f32 %v258, %v854
        %v890 = vmul.f32 %v259, %v854
        %v891 = vmul.f32 %v260, %v854
        %v892 = vmul.f32 %v261, %v854
        %v893 = vmul.f32 %v262, %v854
        %v894 = vmul.f32 %v263, %v854
        %v895 = vmul.f32 %v264, %v854
        %v896 = vmul.f32 %v265, %v854
        %v897 = vmul.f32 %v266, %v854
        %v898 = vmul.f32 %v267, %v854
        %v899 = vmul.f32 %v268, %v854
        %v900 = vmul.f32 %v269, %v854
        %v901 = vmul.f32 %v270, %v854
        %v902 = vmul.f32 %v271, %v854
        %v903 = vadd.f32 %v803, %v855
        %v904 = vadd.f32 %v804, %v856
        %v905 = vadd.f32 %v805, %v857
        %v906 = vadd.f32 %v806, %v858
        %v907 = vadd.f32 %v807, %v859
        %v908 = vadd.f32 %v808, %v860
        %v909 = vadd.f32 %v809, %v861
        %v910 = vadd.f32 %v810, %v862
        %v911 = vadd.f32 %v811, %v863
        %v912 = vadd.f32 %v812, %v864
        %v913 = vadd.f32 %v813, %v865
        %v914 = vadd.f32 %v814, %v866
        %v915 = vadd.f32 %v815, %v867
        %v916 = vadd.f32 %v816, %v868
        %v917 = vadd.f32 %v817, %v869
        %v918 = vadd.f32 %v818, %v870
        %v919 = vadd.f32 %v819, %v871
        %v920 = vadd.f32 %v820, %v872
        %v921 = vadd.f32 %v821, %v873
        %v922 = vadd.f32 %v822, %v874
        %v923 = vadd.f32 %v823, %v875
        %v924 = vadd.f32 %v824, %v876
        %v925 = vadd.f32 %v825, %v877
        %v926 = vadd.f32 %v826, %v878
        %v927 = vadd.f32 %v827, %v879
        %v928 = vadd.f32 %v828, %v880
        %v929 = vadd.f32 %v829, %v881
        %v930 = vadd.f32 %v830, %v882
        %v931 = vadd.f32 %v831, %v883
        %v932 = vadd.f32 %v832, %v884
        %v933 = vadd.f32 %v833, %v885
        %v934 = vadd.f32 %v834, %v886
        %v935 = vadd.f32 %v835, %v887
        %v936 = vadd.f32 %v836, %v888
        %v937 = vadd.f32 %v837, %v889
        %v938 = vadd.f32 %v838, %v890
        %v939 = vadd.f32 %v839, %v891
        %v940 = vadd.f32 %v840, %v892
        %v941 = vadd.f32 %v841, %v893
        %v942 = vadd.f32 %v842, %v894
        %v943 = vadd.f32 %v843, %v895
        %v944 = vadd.f32 %v844, %v896
        %v945 = vadd.f32 %v845, %v897
        %v946 = vadd.f32 %v846, %v898
        %v947 = vadd.f32 %v847, %v899
        %v948 = vadd.f32 %v848, %v900
        %v949 = vadd.f32 %v849, %v901
        %v950 = vadd.f32 %v850, %v902
        %v951 = vrot.slane %v651, 1
        %v952 = vrot.slane %v654, 1
        %v953 = vrot.slane %v657, 1
        %v954 = vrot.slane %v660, 1
        %v955 = vrot.slane %v663, 1
        %v956 = vrot.slane %v666, 1
        %v957 = vrot.slane %v669, 1
        %v958 = vrot.slane %v672, 1
        %v959 = vrot.slane %v675, 1
        %v960 = vrot.slane %v678, 1
        %v961 = vrot.slane %v681, 1
        %v962 = vrot.slane %v684, 1
        %v963 = vrot.slane %v687, 1
        %v964 = vrot.slane %v690, 1
        %v965 = vrot.slane %v693, 1
        %v966 = vrot.slane %v696, 1
        %v967 = vrot.slane %v652, 1
        %v968 = vrot.slane %v655, 1
        %v969 = vrot.slane %v658, 1
        %v970 = vrot.slane %v661, 1
        %v971 = vrot.slane %v664, 1
        %v972 = vrot.slane %v667, 1
        %v973 = vrot.slane %v670, 1
        %v974 = vrot.slane %v673, 1
        %v975 = vrot.slane %v676, 1
        %v976 = vrot.slane %v679, 1
        %v977 = vrot.slane %v682, 1
        %v978 = vrot.slane %v685, 1
        %v979 = vrot.slane %v688, 1
        %v980 = vrot.slane %v691, 1
        %v981 = vrot.slane %v694, 1
        %v982 = vrot.slane %v697, 1
        %v983 = vrot.slane %v653, 1
        %v984 = vrot.slane %v656, 1
        %v985 = vrot.slane %v659, 1
        %v986 = vrot.slane %v662, 1
        %v987 = vrot.slane %v665, 1
        %v988 = vrot.slane %v668, 1
        %v989 = vrot.slane %v671, 1
        %v990 = vrot.slane %v674, 1
        %v991 = vrot.slane %v677, 1
        %v992 = vrot.slane %v680, 1
        %v993 = vrot.slane %v683, 1
        %v994 = vrot.slane %v686, 1
        %v995 = vrot.slane %v689, 1
        %v996 = vrot.slane %v692, 1
        %v997 = vrot.slane %v695, 1
        %v998 = vrot.slane %v698, 1
        %v999 = vlaneseq
        %v1000 = vshrl.u32 %v999, 7
        %vm1001 = vcmp.lt.s32.totalorder %v1000, 7
        %v1002 = vsel %vm1001, %v967, %v983
        %v1003 = vsel %vm1001, %v968, %v984
        %v1004 = vsel %vm1001, %v969, %v985
        %v1005 = vsel %vm1001, %v970, %v986
        %v1006 = vsel %vm1001, %v971, %v987
        %v1007 = vsel %vm1001, %v972, %v988
        %v1008 = vsel %vm1001, %v973, %v989
        %v1009 = vsel %vm1001, %v974, %v990
        %v1010 = vsel %vm1001, %v975, %v991
        %v1011 = vsel %vm1001, %v976, %v992
        %v1012 = vsel %vm1001, %v977, %v993
        %v1013 = vsel %vm1001, %v978, %v994
        %v1014 = vsel %vm1001, %v979, %v995
        %v1015 = vsel %vm1001, %v980, %v996
        %v1016 = vsel %vm1001, %v981, %v997
        %v1017 = vsel %vm1001, %v982, %v998
        %v1018 = vsel %vm1001, %v951, %v967
        %v1019 = vsel %vm1001, %v952, %v968
        %v1020 = vsel %vm1001, %v953, %v969
        %v1021 = vsel %vm1001, %v954, %v970
        %v1022 = vsel %vm1001, %v955, %v971
        %v1023 = vsel %vm1001, %v956, %v972
        %v1024 = vsel %vm1001, %v957, %v973
        %v1025 = vsel %vm1001, %v958, %v974
        %v1026 = vsel %vm1001, %v959, %v975
        %v1027 = vsel %vm1001, %v960, %v976
        %v1028 = vsel %vm1001, %v961, %v977
        %v1029 = vsel %vm1001, %v962, %v978
        %v1030 = vsel %vm1001, %v963, %v979
        %v1031 = vsel %vm1001, %v964, %v980
        %v1032 = vsel %vm1001, %v965, %v981
        %v1033 = vsel %vm1001, %v966, %v982
        %v1034 = vadd.f32 %v415, %v1018
        %v1035 = vadd.f32 %v416, %v1002
        %v1036 = vadd.f32 %v417, %v1019
        %v1037 = vadd.f32 %v418, %v1003
        %v1038 = vadd.f32 %v419, %v1020
        %v1039 = vadd.f32 %v420, %v1004
        %v1040 = vadd.f32 %v421, %v1021
        %v1041 = vadd.f32 %v422, %v1005
        %v1042 = vadd.f32 %v423, %v1022
        %v1043 = vadd.f32 %v424, %v1006
        %v1044 = vadd.f32 %v425, %v1023
        %v1045 = vadd.f32 %v426, %v1007
        %v1046 = vadd.f32 %v427, %v1024
        %v1047 = vadd.f32 %v428, %v1008
        %v1048 = vadd.f32 %v429, %v1025
        %v1049 = vadd.f32 %v430, %v1009
        %v1050 = vadd.f32 %v431, %v1026
        %v1051 = vadd.f32 %v432, %v1010
        %v1052 = vadd.f32 %v433, %v1027
        %v1053 = vadd.f32 %v434, %v1011
        %v1054 = vadd.f32 %v435, %v1028
        %v1055 = vadd.f32 %v436, %v1012
        %v1056 = vadd.f32 %v437, %v1029
        %v1057 = vadd.f32 %v438, %v1013
        %v1058 = vadd.f32 %v439, %v1030
        %v1059 = vadd.f32 %v440, %v1014
        %v1060 = vadd.f32 %v441, %v1031
        %v1061 = vadd.f32 %v442, %v1015
        %v1062 = vadd.f32 %v443, %v1032
        %v1063 = vadd.f32 %v444, %v1016
        %v1064 = vadd.f32 %v445, %v1033
        %v1065 = vadd.f32 %v446, %v1017
        %v1066 = vrot.slane %v903, 2
        %v1067 = vrot.slane %v906, 2
        %v1068 = vrot.slane %v909, 2
        %v1069 = vrot.slane %v912, 2
        %v1070 = vrot.slane %v915, 2
        %v1071 = vrot.slane %v918, 2
        %v1072 = vrot.slane %v921, 2
        %v1073 = vrot.slane %v924, 2
        %v1074 = vrot.slane %v927, 2
        %v1075 = vrot.slane %v930, 2
        %v1076 = vrot.slane %v933, 2
        %v1077 = vrot.slane %v936, 2
        %v1078 = vrot.slane %v939, 2
        %v1079 = vrot.slane %v942, 2
        %v1080 = vrot.slane %v945, 2
        %v1081 = vrot.slane %v948, 2
        %v1082 = vrot.slane %v904, 2
        %v1083 = vrot.slane %v907, 2
        %v1084 = vrot.slane %v910, 2
        %v1085 = vrot.slane %v913, 2
        %v1086 = vrot.slane %v916, 2
        %v1087 = vrot.slane %v919, 2
        %v1088 = vrot.slane %v922, 2
        %v1089 = vrot.slane %v925, 2
        %v1090 = vrot.slane %v928, 2
        %v1091 = vrot.slane %v931, 2
        %v1092 = vrot.slane %v934, 2
        %v1093 = vrot.slane %v937, 2
        %v1094 = vrot.slane %v940, 2
        %v1095 = vrot.slane %v943, 2
        %v1096 = vrot.slane %v946, 2
        %v1097 = vrot.slane %v949, 2
        %v1098 = vrot.slane %v905, 2
        %v1099 = vrot.slane %v908, 2
        %v1100 = vrot.slane %v911, 2
        %v1101 = vrot.slane %v914, 2
        %v1102 = vrot.slane %v917, 2
        %v1103 = vrot.slane %v920, 2
        %v1104 = vrot.slane %v923, 2
        %v1105 = vrot.slane %v926, 2
        %v1106 = vrot.slane %v929, 2
        %v1107 = vrot.slane %v932, 2
        %v1108 = vrot.slane %v935, 2
        %v1109 = vrot.slane %v938, 2
        %v1110 = vrot.slane %v941, 2
        %v1111 = vrot.slane %v944, 2
        %v1112 = vrot.slane %v947, 2
        %v1113 = vrot.slane %v950, 2
        %vm1114 = vcmp.lt.s32.totalorder %v1000, 6
        %v1115 = vsel %vm1114, %v1082, %v1098
        %v1116 = vsel %vm1114, %v1083, %v1099
        %v1117 = vsel %vm1114, %v1084, %v1100
        %v1118 = vsel %vm1114, %v1085, %v1101
        %v1119 = vsel %vm1114, %v1086, %v1102
        %v1120 = vsel %vm1114, %v1087, %v1103
        %v1121 = vsel %vm1114, %v1088, %v1104
        %v1122 = vsel %vm1114, %v1089, %v1105
        %v1123 = vsel %vm1114, %v1090, %v1106
        %v1124 = vsel %vm1114, %v1091, %v1107
        %v1125 = vsel %vm1114, %v1092, %v1108
        %v1126 = vsel %vm1114, %v1093, %v1109
        %v1127 = vsel %vm1114, %v1094, %v1110
        %v1128 = vsel %vm1114, %v1095, %v1111
        %v1129 = vsel %vm1114, %v1096, %v1112
        %v1130 = vsel %vm1114, %v1097, %v1113
        %v1131 = vsel %vm1114, %v1066, %v1082
        %v1132 = vsel %vm1114, %v1067, %v1083
        %v1133 = vsel %vm1114, %v1068, %v1084
        %v1134 = vsel %vm1114, %v1069, %v1085
        %v1135 = vsel %vm1114, %v1070, %v1086
        %v1136 = vsel %vm1114, %v1071, %v1087
        %v1137 = vsel %vm1114, %v1072, %v1088
        %v1138 = vsel %vm1114, %v1073, %v1089
        %v1139 = vsel %vm1114, %v1074, %v1090
        %v1140 = vsel %vm1114, %v1075, %v1091
        %v1141 = vsel %vm1114, %v1076, %v1092
        %v1142 = vsel %vm1114, %v1077, %v1093
        %v1143 = vsel %vm1114, %v1078, %v1094
        %v1144 = vsel %vm1114, %v1079, %v1095
        %v1145 = vsel %vm1114, %v1080, %v1096
        %v1146 = vsel %vm1114, %v1081, %v1097
        %v1147 = vadd.f32 %v1034, %v1131
        %v1148 = vadd.f32 %v1035, %v1115
        %v1149 = vadd.f32 %v1036, %v1132
        %v1150 = vadd.f32 %v1037, %v1116
        %v1151 = vadd.f32 %v1038, %v1133
        %v1152 = vadd.f32 %v1039, %v1117
        %v1153 = vadd.f32 %v1040, %v1134
        %v1154 = vadd.f32 %v1041, %v1118
        %v1155 = vadd.f32 %v1042, %v1135
        %v1156 = vadd.f32 %v1043, %v1119
        %v1157 = vadd.f32 %v1044, %v1136
        %v1158 = vadd.f32 %v1045, %v1120
        %v1159 = vadd.f32 %v1046, %v1137
        %v1160 = vadd.f32 %v1047, %v1121
        %v1161 = vadd.f32 %v1048, %v1138
        %v1162 = vadd.f32 %v1049, %v1122
        %v1163 = vadd.f32 %v1050, %v1139
        %v1164 = vadd.f32 %v1051, %v1123
        %v1165 = vadd.f32 %v1052, %v1140
        %v1166 = vadd.f32 %v1053, %v1124
        %v1167 = vadd.f32 %v1054, %v1141
        %v1168 = vadd.f32 %v1055, %v1125
        %v1169 = vadd.f32 %v1056, %v1142
        %v1170 = vadd.f32 %v1057, %v1126
        %v1171 = vadd.f32 %v1058, %v1143
        %v1172 = vadd.f32 %v1059, %v1127
        %v1173 = vadd.f32 %v1060, %v1144
        %v1174 = vadd.f32 %v1061, %v1128
        %v1175 = vadd.f32 %v1062, %v1145
        %v1176 = vadd.f32 %v1063, %v1129
        %v1177 = vadd.f32 %v1064, %v1146
        %v1178 = vadd.f32 %v1065, %v1130
        %v1179 = vld [vmem:[%s2] sm:$0xf]
        %v1180 = vld [vmem:[%s3] sm:$0x1]
        %v1182 = vlaneseq
        %v1183 = vshrl.u32 %v1182, 7
        %v1184 = vsub.s32 0, %v1183
        %v1185 = vrot.slane %v1180, %v1184
        %vm1187 = vcmask 31744
        %v1189 = vsel %vm1187, %v1147, 0
        %v1192 = vsel %vm1187, %v1148, 0
        %v1195 = vsel %vm1187, %v1149, 0
        %v1198 = vsel %vm1187, %v1150, 0
        %v1201 = vsel %vm1187, %v1151, 0
        %v1204 = vsel %vm1187, %v1152, 0
        %v1207 = vsel %vm1187, %v1153, 0
        %v1210 = vsel %vm1187, %v1154, 0
        %v1213 = vsel %vm1187, %v1155, 0
        %v1216 = vsel %vm1187, %v1156, 0
        %v1219 = vsel %vm1187, %v1157, 0
        %v1222 = vsel %vm1187, %v1158, 0
        %v1225 = vsel %vm1187, %v1159, 0
        %v1228 = vsel %vm1187, %v1160, 0
        %v1231 = vsel %vm1187, %v1161, 0
        %v1234 = vsel %vm1187, %v1162, 0
        %v1237 = vsel %vm1187, %v1163, 0
        %v1240 = vsel %vm1187, %v1164, 0
        %v1243 = vsel %vm1187, %v1165, 0
        %v1246 = vsel %vm1187, %v1166, 0
        %v1249 = vsel %vm1187, %v1167, 0
        %v1252 = vsel %vm1187, %v1168, 0
        %v1255 = vsel %vm1187, %v1169, 0
        %v1258 = vsel %vm1187, %v1170, 0
        %v1261 = vsel %vm1187, %v1171, 0
        %v1264 = vsel %vm1187, %v1172, 0
        %v1267 = vsel %vm1187, %v1173, 0
        %v1270 = vsel %vm1187, %v1174, 0
        %v1273 = vsel %vm1187, %v1175, 0
        %v1276 = vsel %vm1187, %v1176, 0
        %v1279 = vsel %vm1187, %v1177, 0
        %v1282 = vsel %vm1187, %v1178, 0
        %vm1284 = vcmask 1043456
        %v1286 = vsel %vm1284, %v1179, 0
        %1288 = vmatprep.subr.mxu0 0.0
        %1289 = vmatpush1.msra.mxu0 %v1286
        %1290 = vmatprep.subr.mxu0 0.0
        %1291 = vmatpush1.msra.mxu0 0.0
        %1292 = vmatprep.subr.mxu0 0.0
        %1293 = vmatpush1.msra.mxu0 0.0
        %1294 = vmatprep.subr.mxu0 0.0
        %1295 = vmatpush1.msra.mxu0 0.0
        %1296 = vmatprep.subr.mxu0 0.0
        %1297 = vmatpush1.msra.mxu0 0.0
        %1298 = vmatprep.subr.mxu0 0.0
        %1299 = vmatpush1.msra.mxu0 0.0
        %1300 = vmatprep.subr.mxu0 0.0
        %1301 = vmatpush1.msra.mxu0 0.0
        %1302 = vmatprep.subr.mxu0 0.0
        %1303 = vmatpush1.msra.mxu0 0.0
        %1304 = vmatprep.subr.mxu0 0.0
        %1305 = vmatpush1.msra.mxu0 0.0
        %1306 = vmatprep.subr.mxu0 0.0
        %1307 = vmatpush1.msra.mxu0 0.0
        %1308 = vmatprep.subr.mxu0 0.0
        %1309 = vmatpush1.msra.mxu0 0.0
        %1310 = vmatprep.subr.mxu0 0.0
        %1311 = vmatpush1.msra.mxu0 0.0
        %1312 = vmatprep.subr.mxu0 0.0
        %1313 = vmatpush1.msra.mxu0 0.0
        %1314 = vmatprep.subr.mxu0 0.0
        %1315 = vmatpush1.msra.mxu0 0.0
        %1316 = vmatprep.subr.mxu0 0.0
        %1317 = vmatpush1.msra.mxu0 0.0
        %1318 = vmatprep.subr.mxu0 0.0
        %1319 = vmatpush1.msra.mxu0 0.0
        %1320 = vmatprep.subr.mxu0 0.0
        %1321 = vmatpush1.msra.mxu0 0.0
        %1322 = vmatprep.subr.mxu0 0.0
        %1323 = vmatpush1.msra.mxu0 0.0
        %1324 = vmatprep.subr.mxu0 0.0
        %1325 = vmatpush1.msra.mxu0 0.0
        %1326 = vmatprep.subr.mxu0 0.0
        %1327 = vmatpush1.msra.mxu0 0.0
        %1328 = vmatprep.subr.mxu0 0.0
        %1329 = vmatpush1.msra.mxu0 0.0
        %1330 = vmatprep.subr.mxu0 0.0
        %1331 = vmatpush1.msra.mxu0 0.0
        %1332 = vmatprep.subr.mxu0 0.0
        %1333 = vmatpush1.msra.mxu0 0.0
        %1334 = vmatprep.subr.mxu0 0.0
        %1335 = vmatpush1.msra.mxu0 0.0
        %1336 = vmatprep.subr.mxu0 0.0
        %1337 = vmatpush1.msra.mxu0 0.0
        %1338 = vmatprep.subr.mxu0 0.0
        %1339 = vmatpush1.msra.mxu0 0.0
        %1340 = vmatprep.subr.mxu0 0.0
        %1341 = vmatpush1.msra.mxu0 0.0
        %1342 = vmatprep.subr.mxu0 0.0
        %1343 = vmatpush1.msra.mxu0 0.0
        %1344 = vmatprep.subr.mxu0 0.0
        %1345 = vmatpush1.msra.mxu0 0.0
        %1346 = vmatprep.subr.mxu0 0.0
        %1347 = vmatpush1.msra.mxu0 0.0
        %1348 = vmatprep.subr.mxu0 0.0
        %1349 = vmatpush1.msra.mxu0 0.0
        %1350 = vmatprep.subr.mxu0 0.0
        %1351 = vmatpush1.msra.mxu0 0.0
        %1352 = vmatprep.mubr.f32.mxu0 0.0
        %1353 = vmatmul.mubr.f32.gmra.mrb[0].mxu0 %v1189
        %v1354 = vpop.f32.mrb[0].mxu0
        %v1355 = vadd.f32 %v1185, %v1354
        %v1356 = vpop.f32.mrb[0].mxu0
        %1357 = vmatprep.mubr.f32.mxu0 0.0
        %1358 = vmatmul.mubr.f32.gmra.mrb[0].mxu0 %v1192
        %v1359 = vpop.f32.mrb[0].mxu0
        %v1360 = vadd.f32 %v1185, %v1359
        %v1361 = vpop.f32.mrb[0].mxu0
        %1362 = vmatprep.mubr.f32.mxu0 0.0
        %1363 = vmatmul.mubr.f32.gmra.mrb[0].mxu0 %v1195
        %v1364 = vpop.f32.mrb[0].mxu0
        %v1365 = vadd.f32 %v1185, %v1364
        %v1366 = vpop.f32.mrb[0].mxu0
        %1367 = vmatprep.mubr.f32.mxu0 0.0
        %1368 = vmatmul.mubr.f32.gmra.mrb[0].mxu0 %v1198
        %v1369 = vpop.f32.mrb[0].mxu0
        %v1370 = vadd.f32 %v1185, %v1369
        %v1371 = vpop.f32.mrb[0].mxu0
        %1372 = vmatprep.mubr.f32.mxu0 0.0
        %1373 = vmatmul.mubr.f32.gmra.mrb[0].mxu0 %v1201
        %v1374 = vpop.f32.mrb[0].mxu0
        %v1375 = vadd.f32 %v1185, %v1374
        %v1376 = vpop.f32.mrb[0].mxu0
        %1377 = vmatprep.mubr.f32.mxu0 0.0
        %1378 = vmatmul.mubr.f32.gmra.mrb[0].mxu0 %v1204
        %v1379 = vpop.f32.mrb[0].mxu0
        %v1380 = vadd.f32 %v1185, %v1379
        %v1381 = vpop.f32.mrb[0].mxu0
        %1382 = vmatprep.mubr.f32.mxu0 0.0
        %1383 = vmatmul.mubr.f32.gmra.mrb[0].mxu0 %v1207
        %v1384 = vpop.f32.mrb[0].mxu0
        %v1385 = vadd.f32 %v1185, %v1384
        %v1386 = vpop.f32.mrb[0].mxu0
        %1387 = vmatprep.mubr.f32.mxu0 0.0
        %1388 = vmatmul.mubr.f32.gmra.mrb[0].mxu0 %v1210
        %v1389 = vpop.f32.mrb[0].mxu0
        %v1390 = vadd.f32 %v1185, %v1389
        %v1391 = vpop.f32.mrb[0].mxu0
        %1392 = vmatprep.mubr.f32.mxu0 0.0
        %1393 = vmatmul.mubr.f32.gmra.mrb[0].mxu0 %v1213
        %v1394 = vpop.f32.mrb[0].mxu0
        %v1395 = vadd.f32 %v1185, %v1394
        %v1396 = vpop.f32.mrb[0].mxu0
        %1397 = vmatprep.mubr.f32.mxu0 0.0
        %1398 = vmatmul.mubr.f32.gmra.mrb[0].mxu0 %v1216
        %v1399 = vpop.f32.mrb[0].mxu0
        %v1400 = vadd.f32 %v1185, %v1399
        %v1401 = vpop.f32.mrb[0].mxu0
        %1402 = vmatprep.mubr.f32.mxu0 0.0
        %1403 = vmatmul.mubr.f32.gmra.mrb[0].mxu0 %v1219
        %v1404 = vpop.f32.mrb[0].mxu0
        %v1405 = vadd.f32 %v1185, %v1404
        %v1406 = vpop.f32.mrb[0].mxu0
        %1407 = vmatprep.mubr.f32.mxu0 0.0
        %1408 = vmatmul.mubr.f32.gmra.mrb[0].mxu0 %v1222
        %v1409 = vpop.f32.mrb[0].mxu0
        %v1410 = vadd.f32 %v1185, %v1409
        %v1411 = vpop.f32.mrb[0].mxu0
        %1412 = vmatprep.mubr.f32.mxu0 0.0
        %1413 = vmatmul.mubr.f32.gmra.mrb[0].mxu0 %v1225
        %v1414 = vpop.f32.mrb[0].mxu0
        %v1415 = vadd.f32 %v1185, %v1414
        %v1416 = vpop.f32.mrb[0].mxu0
        %1417 = vmatprep.mubr.f32.mxu0 0.0
        %1418 = vmatmul.mubr.f32.gmra.mrb[0].mxu0 %v1228
        %v1419 = vpop.f32.mrb[0].mxu0
        %v1420 = vadd.f32 %v1185, %v1419
        %v1421 = vpop.f32.mrb[0].mxu0
        %1422 = vmatprep.mubr.f32.mxu0 0.0
        %1423 = vmatmul.mubr.f32.gmra.mrb[0].mxu0 %v1231
        %v1424 = vpop.f32.mrb[0].mxu0
        %v1425 = vadd.f32 %v1185, %v1424
        %v1426 = vpop.f32.mrb[0].mxu0
        %1427 = vmatprep.mubr.f32.mxu0 0.0
        %1428 = vmatmul.mubr.f32.gmra.mrb[0].mxu0 %v1234
        %v1429 = vpop.f32.mrb[0].mxu0
        %v1430 = vadd.f32 %v1185, %v1429
        %v1431 = vpop.f32.mrb[0].mxu0
        %1432 = vmatprep.mubr.f32.mxu0 0.0
        %1433 = vmatmul.mubr.f32.gmra.mrb[0].mxu0 %v1237
        %v1434 = vpop.f32.mrb[0].mxu0
        %v1435 = vadd.f32 %v1185, %v1434
        %v1436 = vpop.f32.mrb[0].mxu0
        %1437 = vmatprep.mubr.f32.mxu0 0.0
        %1438 = vmatmul.mubr.f32.gmra.mrb[0].mxu0 %v1240
        %v1439 = vpop.f32.mrb[0].mxu0
        %v1440 = vadd.f32 %v1185, %v1439
        %v1441 = vpop.f32.mrb[0].mxu0
        %1442 = vmatprep.mubr.f32.mxu0 0.0
        %1443 = vmatmul.mubr.f32.gmra.mrb[0].mxu0 %v1243
        %v1444 = vpop.f32.mrb[0].mxu0
        %v1445 = vadd.f32 %v1185, %v1444
        %v1446 = vpop.f32.mrb[0].mxu0
        %1447 = vmatprep.mubr.f32.mxu0 0.0
        %1448 = vmatmul.mubr.f32.gmra.mrb[0].mxu0 %v1246
        %v1449 = vpop.f32.mrb[0].mxu0
        %v1450 = vadd.f32 %v1185, %v1449
        %v1451 = vpop.f32.mrb[0].mxu0
        %1452 = vmatprep.mubr.f32.mxu0 0.0
        %1453 = vmatmul.mubr.f32.gmra.mrb[0].mxu0 %v1249
        %v1454 = vpop.f32.mrb[0].mxu0
        %v1455 = vadd.f32 %v1185, %v1454
        %v1456 = vpop.f32.mrb[0].mxu0
        %1457 = vmatprep.mubr.f32.mxu0 0.0
        %1458 = vmatmul.mubr.f32.gmra.mrb[0].mxu0 %v1252
        %v1459 = vpop.f32.mrb[0].mxu0
        %v1460 = vadd.f32 %v1185, %v1459
        %v1461 = vpop.f32.mrb[0].mxu0
        %1462 = vmatprep.mubr.f32.mxu0 0.0
        %1463 = vmatmul.mubr.f32.gmra.mrb[0].mxu0 %v1255
        %v1464 = vpop.f32.mrb[0].mxu0
        %v1465 = vadd.f32 %v1185, %v1464
        %v1466 = vpop.f32.mrb[0].mxu0
        %1467 = vmatprep.mubr.f32.mxu0 0.0
        %1468 = vmatmul.mubr.f32.gmra.mrb[0].mxu0 %v1258
        %v1469 = vpop.f32.mrb[0].mxu0
        %v1470 = vadd.f32 %v1185, %v1469
        %v1471 = vpop.f32.mrb[0].mxu0
        %1472 = vmatprep.mubr.f32.mxu0 0.0
        %1473 = vmatmul.mubr.f32.gmra.mrb[0].mxu0 %v1261
        %v1474 = vpop.f32.mrb[0].mxu0
        %v1475 = vadd.f32 %v1185, %v1474
        %v1476 = vpop.f32.mrb[0].mxu0
        %1477 = vmatprep.mubr.f32.mxu0 0.0
        %1478 = vmatmul.mubr.f32.gmra.mrb[0].mxu0 %v1264
        %v1479 = vpop.f32.mrb[0].mxu0
        %v1480 = vadd.f32 %v1185, %v1479
        %v1481 = vpop.f32.mrb[0].mxu0
        %1482 = vmatprep.mubr.f32.mxu0 0.0
        %1483 = vmatmul.mubr.f32.gmra.mrb[0].mxu0 %v1267
        %v1484 = vpop.f32.mrb[0].mxu0
        %v1485 = vadd.f32 %v1185, %v1484
        %v1486 = vpop.f32.mrb[0].mxu0
        %1487 = vmatprep.mubr.f32.mxu0 0.0
        %1488 = vmatmul.mubr.f32.gmra.mrb[0].mxu0 %v1270
        %v1489 = vpop.f32.mrb[0].mxu0
        %v1490 = vadd.f32 %v1185, %v1489
        %v1491 = vpop.f32.mrb[0].mxu0
        %1492 = vmatprep.mubr.f32.mxu0 0.0
        %1493 = vmatmul.mubr.f32.gmra.mrb[0].mxu0 %v1273
        %v1494 = vpop.f32.mrb[0].mxu0
        %v1495 = vadd.f32 %v1185, %v1494
        %v1496 = vpop.f32.mrb[0].mxu0
        %1497 = vmatprep.mubr.f32.mxu0 0.0
        %1498 = vmatmul.mubr.f32.gmra.mrb[0].mxu0 %v1276
        %v1499 = vpop.f32.mrb[0].mxu0
        %v1500 = vadd.f32 %v1185, %v1499
        %v1501 = vpop.f32.mrb[0].mxu0
        %1502 = vmatprep.mubr.f32.mxu0 0.0
        %1503 = vmatmul.mubr.f32.gmra.mrb[0].mxu0 %v1279
        %v1504 = vpop.f32.mrb[0].mxu0
        %v1505 = vadd.f32 %v1185, %v1504
        %v1506 = vpop.f32.mrb[0].mxu0
        %1507 = vmatprep.mubr.f32.mxu0 0.0
        %1508 = vmatmul.mubr.f32.gmra.mrb[0].mxu0 %v1282
        %v1509 = vpop.f32.mrb[0].mxu0
        %v1510 = vadd.f32 %v1185, %v1509
        %v1511 = vpop.f32.mrb[0].mxu0
        %1512 = vdwg.mxu0
        %1513 = vst [vmem:[%s209] sm:$0xff] %v1355
        %1514 = vst [vmem:[%s209 + $0x8] sm:$0xff] %v1360
        %1515 = vst [vmem:[%s209 + $0x10] sm:$0xff] %v1365
        %1516 = vst [vmem:[%s209 + $0x18] sm:$0xff] %v1370
        %1517 = vst [vmem:[%s209 + $0x20] sm:$0xff] %v1375
        %1518 = vst [vmem:[%s209 + $0x28] sm:$0xff] %v1380
        %1519 = vst [vmem:[%s209 + $0x30] sm:$0xff] %v1385
        %1520 = vst [vmem:[%s209 + $0x38] sm:$0xff] %v1390
        %1521 = vst [vmem:[%s209 + $0x40] sm:$0xff] %v1395
        %1522 = vst [vmem:[%s209 + $0x48] sm:$0xff] %v1400
        %1523 = vst [vmem:[%s209 + $0x50] sm:$0xff] %v1405
        %1524 = vst [vmem:[%s209 + $0x58] sm:$0xff] %v1410
        %1525 = vst [vmem:[%s209 + $0x60] sm:$0xff] %v1415
        %1526 = vst [vmem:[%s209 + $0x68] sm:$0xff] %v1420
        %1527 = vst [vmem:[%s209 + $0x70] sm:$0xff] %v1425
        %1528 = vst [vmem:[%s209 + $0x78] sm:$0xff] %v1430
        %1529 = vst [vmem:[%s209 + $0x80] sm:$0xff] %v1435
        %1530 = vst [vmem:[%s209 + $0x88] sm:$0xff] %v1440
        %1531 = vst [vmem:[%s209 + $0x90] sm:$0xff] %v1445
        %1532 = vst [vmem:[%s209 + $0x98] sm:$0xff] %v1450
        %1533 = vst [vmem:[%s209 + $0xa0] sm:$0xff] %v1455
        %1534 = vst [vmem:[%s209 + $0xa8] sm:$0xff] %v1460
        %1535 = vst [vmem:[%s209 + $0xb0] sm:$0xff] %v1465
        %1536 = vst [vmem:[%s209 + $0xb8] sm:$0xff] %v1470
        %1537 = vst [vmem:[%s209 + $0xc0] sm:$0xff] %v1475
        %1538 = vst [vmem:[%s209 + $0xc8] sm:$0xff] %v1480
        %1539 = vst [vmem:[%s209 + $0xd0] sm:$0xff] %v1485
        %1540 = vst [vmem:[%s209 + $0xd8] sm:$0xff] %v1490
        %1541 = vst [vmem:[%s209 + $0xe0] sm:$0xff] %v1495
        %1542 = vst [vmem:[%s209 + $0xe8] sm:$0xff] %v1500
        %1543 = vst [vmem:[%s209 + $0xf0] sm:$0xff] %v1505
        %1544 = vst [vmem:[%s209 + $0xf8] sm:$0xff] %v1510
        %s1545 = sand.u32 %s131, 1
        %s1546 = scalar_lea.sflag [#allocation3], %s1545
        %s1547 = sand.u32 %s131, 1
        %s1548 = smul.addr %s1547, 256
        %s1549 = scalar_lea.vmem [#allocation2], %s1548
        // Predicated region
        $region37: #{tpu_custom_call.1} parent=35 // pred_check
          %p1550 = pneg %p141
        $region38: #{tpu_custom_call.1} parent=35 // pred_check_branch
          %1552 = sbr.rel (%p1550) target = $region40
        $region39: #{tpu_custom_call.1} parent=35 // pred_region
          %s1553 = sadd.s32 %s22, %s23
          %s1555 = ssub.s32 4096, 4096
          %1556 = vsyncadd %s1546, %s1555
          %s1557 = smul.addr %s1553, 32
          %s1558 = smul.addr %s1557, 128
          %s1559 = scalar_lea.hbm %s4, %s1558
          %s1560 = sshll.u32 %s1549, 4
          %s1561 = int_to_ptr.vmem [resolvable:$true] %s1560
          %1566 = dma.vmem_to_hbm [thread:$0]  %s1561, 4096, %s1559, %s1546, 128, 128, 8
        $region40: #{tpu_custom_call.1} parent=35 // pred_fallthru
          _
      $region36: #{tpu_custom_call.1} parent=5 // pred_fallthru
        _
      %p1567 = scmp.le.s32.totalorder 2, %s13
      // Predicated region
      $region41: #{tpu_custom_call.1} parent=5 // pred_check
        %p1568 = pneg %p1567
      $region42: #{tpu_custom_call.1} parent=5 // pred_check_branch
        %1570 = sbr.rel (%p1568) target = $region44
      $region43: #{tpu_custom_call.1} parent=5 // pred_region
        %s1571 = ssub.s32 %s13, 2
        // Predicated region
        $region45: #{tpu_custom_call.1} parent=43 // pred_check
          %p1572 = pneg %p147
        $region46: #{tpu_custom_call.1} parent=43 // pred_check_branch
          %1574 = sbr.rel (%p1572) target = $region48
        $region47: #{tpu_custom_call.1} parent=43 // pred_region
          %s1575 = sand.u32 %s132, 1
          %s1576 = scalar_lea.sflag [#allocation3], %s1575
          %s1577 = sand.u32 %s132, 1
          %s1578 = smul.addr %s1577, 256
          %s1579 = scalar_lea.vmem [#allocation2], %s1578
          %1580 = dma.done %s1576, 4096
        $region48: #{tpu_custom_call.1} parent=43 // pred_fallthru
          _
      $region44: #{tpu_custom_call.1} parent=5 // pred_fallthru
        _
    $region6: #{tpu_custom_call.1} parent=1 // loop_footer
      %s17 = sadd.s32 1, %s13
    $region7: #{tpu_custom_call.1} parent=1 // loop_footer_branch
      %12 = sbr.rel target = $region3
    $region8: #{tpu_custom_call.1} parent=1 // loop_exit
      _
    %1581 = vsyncpa [#allocation3], 1
    %s1582 = scalar_lea.sflag [#allocation3], 1
    %1583 = vsyncpa %s1582, 1

</llo_original>
